<compile_context>
chip_gen: v7x
topology: tpu7x:2x2x1
jax: 0.10.0
libtpu: 0.0.40
codegen_flags: <defaults>
</compile_context>

<pallas_src>
import jax
import jax.numpy as jnp
from jax.experimental import pallas as pl
from jax.experimental.pallas import tpu as pltpu

C_IN, C_MID1, C_MID2, C_OUT = 512, 256, 128, 3
C_OUT_PAD = 8          # pad 3 -> 8 output channels (sublane multiple); sliced off after
TL_MAX = 2048          # max L positions per grid step


def _round_up(a, b):
    return (a + b - 1) // b * b


def _fused_mlp_kernel(x_ref, w1_ref, b1_ref, w2_ref, b2_ref, w3_ref, b3_ref, o_ref):
    # x block: (1, C_IN, TL) f32 -> cast to bf16 in VMEM (no wrapper pre-pass).
    x = x_ref[0].astype(w1_ref.dtype)                                   # (C_IN, TL)
    # layer 1: ConvTranspose1d(512 -> 256, k=1) + relu   (bf16 MXU, f32 acc)
    h1 = jnp.dot(w1_ref[...], x, preferred_element_type=jnp.float32)   # (C_MID1, TL)
    h1 = jnp.maximum(h1 + b1_ref[...], 0.0).astype(w2_ref.dtype)
    # layer 2: ConvTranspose1d(256 -> 128, k=1) + relu
    h2 = jnp.dot(w2_ref[...], h1, preferred_element_type=jnp.float32)  # (C_MID2, TL)
    h2 = jnp.maximum(h2 + b2_ref[...], 0.0).astype(w3_ref.dtype)
    # layer 3: ConvTranspose2d(128 -> 3, k=1); out channels zero-padded to 8
    h3 = jnp.dot(w3_ref[...], h2, preferred_element_type=jnp.float32)  # (C_OUT_PAD, TL)
    o_ref[0] = h3 + b3_ref[...]


def prepack_params(params, compute_dtype=jnp.bfloat16):
    """One-time packing: transpose to (C_out, C_in), pad layer 3 to C_OUT_PAD,
    cast weights to the MXU compute dtype; biases stay f32 as (C, 1) columns."""
    w1, b1, w2, b2, w3, b3 = params
    w1t = w1.T.astype(compute_dtype)                                              # (256, 512)
    w2t = w2.T.astype(compute_dtype)                                              # (128, 256)
    w3t = jnp.pad(w3.T, ((0, C_OUT_PAD - C_OUT), (0, 0))).astype(compute_dtype)   # (8, 128)
    b1c = b1.reshape(C_MID1, 1).astype(jnp.float32)
    b2c = b2.reshape(C_MID2, 1).astype(jnp.float32)
    b3c = jnp.pad(b3.reshape(C_OUT, 1).astype(jnp.float32),
                  ((0, C_OUT_PAD - C_OUT), (0, 0)))                               # (8, 1)
    return (w1t, b1c, w2t, b2c, w3t, b3c)


def model_forward(x_ncl, packed_params):
    """x_ncl: (N, 512, L) float32 -> (N, 3, L, 1) float32."""
    w1t, b1, w2t, b2, w3t, b3 = packed_params
    N, C, L = x_ncl.shape
    assert C == C_IN

    # L tile: whole L if it fits (block == full dim is always legal), otherwise
    # multiples of 128 up to TL_MAX with Pallas masking the partial last block.
    TL = L if L <= TL_MAX else TL_MAX
    if N == 1 and L > 256:
        # v7x megacore: guarantee >= 2 grid steps even when N == 1.
        TL = min(TL, _round_up(pl.cdiv(L, 2), 128))
    grid = (N, pl.cdiv(L, TL))

    out = pl.pallas_call(
        _fused_mlp_kernel,
        out_shape=jax.ShapeDtypeStruct((N, C_OUT_PAD, L), jnp.float32),
        grid=grid,
        in_specs=[
            pl.BlockSpec((1, C_IN, TL), lambda n, l: (n, 0, l)),        # x tile (pipelined)
            pl.BlockSpec((C_MID1, C_IN), lambda n, l: (0, 0)),          # weights: VMEM-resident
            pl.BlockSpec((C_MID1, 1), lambda n, l: (0, 0)),
            pl.BlockSpec((C_MID2, C_MID1), lambda n, l: (0, 0)),
            pl.BlockSpec((C_MID2, 1), lambda n, l: (0, 0)),
            pl.BlockSpec((C_OUT_PAD, C_MID2), lambda n, l: (0, 0)),
            pl.BlockSpec((C_OUT_PAD, 1), lambda n, l: (0, 0)),
        ],
        out_specs=pl.BlockSpec((1, C_OUT_PAD, TL), lambda n, l: (n, 0, l)),
        compiler_params=pltpu.CompilerParams(
            dimension_semantics=("parallel", "parallel"),
            vmem_limit_bytes=40 * 1024 * 1024,
        ),
    )(x_ncl, w1t, b1, w2t, b2, w3t, b3)

    out = out[:, :C_OUT, :]             # drop zero channel padding -> (N, 3, L)
    return out[..., None]               # (N, 3, L, 1)


def init_params(key):
    """Deterministic synthetic params, shapes matching the PyTorch module.

    ConvTranspose weight (C_in, C_out, k=1) is stored as (C_in, C_out),
    biases as (C_out,).  Uniform(-1/sqrt(fan), +1/sqrt(fan)) mirrors PyTorch's
    default conv init scale."""
    ks = jax.random.split(key, 6)

    def u(k, shape, fan):
        bound = 1.0 / jnp.sqrt(jnp.float32(fan))
        return jax.random.uniform(k, shape, jnp.float32, -bound, bound)

    w1 = u(ks[0], (C_IN, C_MID1), C_IN)
    b1 = u(ks[1], (C_MID1,), C_IN)
    w2 = u(ks[2], (C_MID1, C_MID2), C_MID1)
    b2 = u(ks[3], (C_MID2,), C_MID1)
    w3 = u(ks[4], (C_MID2, C_OUT), C_MID2)
    b3 = u(ks[5], (C_OUT,), C_MID2)
    return (w1, b1, w2, b2, w3, b3)


def _reference(x_ncl, params):
    """Pure-JAX f32 reference of the fixed forward pass."""
    w1, b1, w2, b2, w3, b3 = params
    h = jnp.einsum('ncl,cm->nml', x_ncl, w1) + b1[None, :, None]
    h = jnp.maximum(h, 0.0)
    h = jnp.einsum('ncl,cm->nml', h, w2) + b2[None, :, None]
    h = jnp.maximum(h, 0.0)
    h = jnp.einsum('ncl,cm->nml', h, w3) + b3[None, :, None]
    return h[..., None]


if __name__ == "__main__":
    key = jax.random.PRNGKey(0)
    k_x, k_p = jax.random.split(key)

    # matches x1 = torch.randn(4, 512, 7)
    x1 = jax.random.normal(k_x, (4, 512, 7), dtype=jnp.float32)
    params = init_params(k_p)
    packed = prepack_params(params)     # one-time weight packing (not per call)

    out = jax.jit(model_forward)(x1, packed)
    jax.block_until_ready(out)
    assert out.shape == (4, 3, 7, 1), out.shape

    # bf16-matmul / f32-accumulate tolerance check vs. f32 reference.
    ref = _reference(x1, params)
    assert jnp.allclose(out, ref, rtol=5e-2, atol=5e-2), float(jnp.max(jnp.abs(out - ref)))

    print("KERNEL_OK")
</pallas_src>

<mosaic_0001>
module attributes {stable_mosaic.version = 11 : i64} {
  func.func @_fused_mlp_kernel(%arg0: i32, %arg1: i32, %arg2: memref<1x512x7xf32, #tpu.memory_space<vmem>>, %arg3: memref<256x512xbf16, #tpu.memory_space<vmem>>, %arg4: memref<256x1xf32, #tpu.memory_space<vmem>>, %arg5: memref<128x256xbf16, #tpu.memory_space<vmem>>, %arg6: memref<128x1xf32, #tpu.memory_space<vmem>>, %arg7: memref<8x128xbf16, #tpu.memory_space<vmem>>, %arg8: memref<8x1xf32, #tpu.memory_space<vmem>>, %arg9: memref<1x8x7xf32, #tpu.memory_space<vmem>>) attributes {dimension_semantics = [#tpu.dimension_semantics<parallel>, #tpu.dimension_semantics<parallel>], iteration_bounds = array<i64: 4, 1>, scalar_prefetch = 0 : i64, scratch_operands = 0 : i64, tpu.core_type = #tpu.core_type<tc>, window_params = [{transform_indices = @transform_0, window_bounds = array<i64: 1, 512, 7>}, {pipeline_mode = #tpu.pipeline_mode<synchronous>, transform_indices = @transform_1, window_bounds = array<i64: 256, 512>}, {pipeline_mode = #tpu.pipeline_mode<synchronous>, transform_indices = @transform_2, window_bounds = array<i64: 256, 1>}, {pipeline_mode = #tpu.pipeline_mode<synchronous>, transform_indices = @transform_3, window_bounds = array<i64: 128, 256>}, {pipeline_mode = #tpu.pipeline_mode<synchronous>, transform_indices = @transform_4, window_bounds = array<i64: 128, 1>}, {pipeline_mode = #tpu.pipeline_mode<synchronous>, transform_indices = @transform_5, window_bounds = array<i64: 8, 128>}, {pipeline_mode = #tpu.pipeline_mode<synchronous>, transform_indices = @transform_6, window_bounds = array<i64: 8, 1>}, {transform_indices = @transform_7, window_bounds = array<i64: 1, 8, 7>}]} {
    %c0 = arith.constant 0 : index
    %c0_0 = arith.constant 0 : index
    %c0_1 = arith.constant 0 : index
    %0 = vector.load %arg2[%c0, %c0_0, %c0_1] : memref<1x512x7xf32, #tpu.memory_space<vmem>>, vector<1x512x7xf32>
    %1 = vector.shape_cast %0 : vector<1x512x7xf32> to vector<512x7xf32>
    %2 = arith.truncf %1 : vector<512x7xf32> to vector<512x7xbf16>
    %c0_2 = arith.constant 0 : index
    %c0_3 = arith.constant 0 : index
    %3 = vector.load %arg3[%c0_2, %c0_3] : memref<256x512xbf16, #tpu.memory_space<vmem>>, vector<256x512xbf16>
    %cst = arith.constant dense<0.000000e+00> : vector<256x7xf32>
    %4 = tpu.matmul %3, %2, %cst {dimension_numbers = #tpu.dot_dimension_numbers<[1], [0], [0], [1], [0, 0, 1, 1], [], []>} : vector<256x512xbf16>, vector<512x7xbf16>, vector<256x7xf32> -> vector<256x7xf32>
    %c0_4 = arith.constant 0 : index
    %c0_5 = arith.constant 0 : index
    %5 = vector.load %arg4[%c0_4, %c0_5] : memref<256x1xf32, #tpu.memory_space<vmem>>, vector<256x1xf32>
    %6 = vector.broadcast %5 : vector<256x1xf32> to vector<256x7xf32>
    %7 = arith.addf %4, %6 : vector<256x7xf32>
    %cst_6 = arith.constant 0.000000e+00 : f32
    %8 = vector.broadcast %cst_6 : f32 to vector<256x7xf32>
    %9 = arith.maximumf %7, %8 : vector<256x7xf32>
    %10 = arith.truncf %9 : vector<256x7xf32> to vector<256x7xbf16>
    %c0_7 = arith.constant 0 : index
    %c0_8 = arith.constant 0 : index
    %11 = vector.load %arg5[%c0_7, %c0_8] : memref<128x256xbf16, #tpu.memory_space<vmem>>, vector<128x256xbf16>
    %cst_9 = arith.constant dense<0.000000e+00> : vector<128x7xf32>
    %12 = tpu.matmul %11, %10, %cst_9 {dimension_numbers = #tpu.dot_dimension_numbers<[1], [0], [0], [1], [0, 0, 1, 1], [], []>} : vector<128x256xbf16>, vector<256x7xbf16>, vector<128x7xf32> -> vector<128x7xf32>
    %c0_10 = arith.constant 0 : index
    %c0_11 = arith.constant 0 : index
    %13 = vector.load %arg6[%c0_10, %c0_11] : memref<128x1xf32, #tpu.memory_space<vmem>>, vector<128x1xf32>
    %14 = vector.broadcast %13 : vector<128x1xf32> to vector<128x7xf32>
    %15 = arith.addf %12, %14 : vector<128x7xf32>
    %cst_12 = arith.constant 0.000000e+00 : f32
    %16 = vector.broadcast %cst_12 : f32 to vector<128x7xf32>
    %17 = arith.maximumf %15, %16 : vector<128x7xf32>
    %18 = arith.truncf %17 : vector<128x7xf32> to vector<128x7xbf16>
    %c0_13 = arith.constant 0 : index
    %c0_14 = arith.constant 0 : index
    %19 = vector.load %arg7[%c0_13, %c0_14] : memref<8x128xbf16, #tpu.memory_space<vmem>>, vector<8x128xbf16>
    %cst_15 = arith.constant dense<0.000000e+00> : vector<8x7xf32>
    %20 = tpu.matmul %19, %18, %cst_15 {dimension_numbers = #tpu.dot_dimension_numbers<[1], [0], [0], [1], [0, 0, 1, 1], [], []>} : vector<8x128xbf16>, vector<128x7xbf16>, vector<8x7xf32> -> vector<8x7xf32>
    %c0_16 = arith.constant 0 : index
    %c0_17 = arith.constant 0 : index
    %21 = vector.load %arg8[%c0_16, %c0_17] : memref<8x1xf32, #tpu.memory_space<vmem>>, vector<8x1xf32>
    %22 = vector.broadcast %21 : vector<8x1xf32> to vector<8x7xf32>
    %23 = arith.addf %20, %22 : vector<8x7xf32>
    %c0_18 = arith.constant 0 : index
    %c0_19 = arith.constant 0 : index
    %c0_20 = arith.constant 0 : index
    %24 = vector.load %arg9[%c0_18, %c0_19, %c0_20] : memref<1x8x7xf32, #tpu.memory_space<vmem>>, vector<1x8x7xf32>
    %25 = vector.shape_cast %24 : vector<1x8x7xf32> to vector<8x7xf32>
    %26 = vector.shape_cast %23 : vector<8x7xf32> to vector<1x8x7xf32>
    tpu.vector_store %arg9[%c0_18, %c0_19, %c0_20], %26 {strides = array<i32>} : memref<1x8x7xf32, #tpu.memory_space<vmem>>, vector<1x8x7xf32>,
    return
  }
  func.func @transform_0(%arg0: i32, %arg1: i32) -> (i32, i32, i32) {
    %c0_i32 = arith.constant 0 : i32
    %c0_i32_0 = arith.constant 0 : i32
    return %arg0, %c0_i32, %arg1 : i32, i32, i32
  }
  func.func @transform_1(%arg0: i32, %arg1: i32) -> (i32, i32) {
    %c0_i32 = arith.constant 0 : i32
    %c0_i32_0 = arith.constant 0 : i32
    %c0_i32_1 = arith.constant 0 : i32
    return %c0_i32, %c0_i32_0 : i32, i32
  }
  func.func @transform_2(%arg0: i32, %arg1: i32) -> (i32, i32) {
    %c0_i32 = arith.constant 0 : i32
    %c0_i32_0 = arith.constant 0 : i32
    %c0_i32_1 = arith.constant 0 : i32
    return %c0_i32, %c0_i32_0 : i32, i32
  }
  func.func @transform_3(%arg0: i32, %arg1: i32) -> (i32, i32) {
    %c0_i32 = arith.constant 0 : i32
    %c0_i32_0 = arith.constant 0 : i32
    %c0_i32_1 = arith.constant 0 : i32
    return %c0_i32, %c0_i32_0 : i32, i32
  }
  func.func @transform_4(%arg0: i32, %arg1: i32) -> (i32, i32) {
    %c0_i32 = arith.constant 0 : i32
    %c0_i32_0 = arith.constant 0 : i32
    %c0_i32_1 = arith.constant 0 : i32
    return %c0_i32, %c0_i32_0 : i32, i32
  }
  func.func @transform_5(%arg0: i32, %arg1: i32) -> (i32, i32) {
    %c0_i32 = arith.constant 0 : i32
    %c0_i32_0 = arith.constant 0 : i32
    %c0_i32_1 = arith.constant 0 : i32
    return %c0_i32, %c0_i32_0 : i32, i32
  }
  func.func @transform_6(%arg0: i32, %arg1: i32) -> (i32, i32) {
    %c0_i32 = arith.constant 0 : i32
    %c0_i32_0 = arith.constant 0 : i32
    %c0_i32_1 = arith.constant 0 : i32
    return %c0_i32, %c0_i32_0 : i32, i32
  }
  func.func @transform_7(%arg0: i32, %arg1: i32) -> (i32, i32, i32) {
    %c0_i32 = arith.constant 0 : i32
    %c0_i32_0 = arith.constant 0 : i32
    return %arg0, %c0_i32, %arg1 : i32, i32, i32
  }
}

</mosaic_0001>

<llo_original>
// kernel: model_forward.1
$region0: #{model_forward.1}
  #allocation0 [shape = 'u32[]', space=smem, size = 0x4, offset = 0x4, fixed_abs, tag = 'smem constant byte address 0x4 - core index']
  #allocation1 [shape = 'u32[144,128]{1,0:T(1,128)}', space=vmem, size = 0x12000, scoped, tag = 'internal scratch']
  %s0 = inlined_call_operand.vmem [shape: f32[4,512,7], index: 0, kind: input, shape index: {}]
  %s1 = inlined_call_operand.vmem [shape: bf16[256,512], index: 1, kind: input, shape index: {}]
  %s2 = inlined_call_operand.vmem [shape: f32[256,1], index: 2, kind: input, shape index: {}]
  %s3 = inlined_call_operand.vmem [shape: bf16[128,256], index: 3, kind: input, shape index: {}]
  %s4 = inlined_call_operand.vmem [shape: f32[128,1], index: 4, kind: input, shape index: {}]
  %s5 = inlined_call_operand.vmem [shape: bf16[8,128], index: 5, kind: input, shape index: {}]
  %s6 = inlined_call_operand.vmem [shape: f32[8,1], index: 6, kind: input, shape index: {}]
  %s7 = inlined_call_operand.vmem [shape: f32[4,8,7], index: 7, kind: output, shape index: {}]
  %s8 = sld [smem:[#allocation0]]
  $region61: #{model_forward.1} parent=0
    _
  %s10 = ssub.s32 1, %s8
  %s11 = scalar_select 0, %s10, %s8
  loop: start=0, step=1, limit=6
  $region2: #{model_forward.1} parent=0 // loop_pre_header
    _
  $region3: #{model_forward.1} parent=0 // loop_header
    %s13 = sphi 0, %s17
    %p14 = scmp.ge.s32.totalorder %s13, 6
    %s20 = sphi 0, %s32
    %s21 = sphi 0, %s28
    %s22 = sphi 0, %s20
    %s23 = sphi 0, %s21
    %s24 = sphi 0, %s22
    %s25 = sphi 0, %s23
    %s37 = sphi 0, %s39
    %s40 = sphi 0, %s37
    %s41 = sphi 0, %s40
    %s57 = sphi 0, %s41
    %s61 = sphi 0, %s61
    %s63 = sphi 0, %s61
    %s64 = sphi 0, %s63
    %s78 = sphi 0, %s64
    %s82 = sphi 0, %s82
    %s84 = sphi 0, %s82
    %s85 = sphi 0, %s84
    %s99 = sphi 0, %s85
    %s103 = sphi 0, %s103
    %s105 = sphi 0, %s103
    %s106 = sphi 0, %s105
    %s120 = sphi 0, %s106
    %s124 = sphi 0, %s124
    %s126 = sphi 0, %s124
    %s127 = sphi 0, %s126
    %s141 = sphi 0, %s127
    %s145 = sphi 0, %s145
    %s147 = sphi 0, %s145
    %s148 = sphi 0, %s147
    %s162 = sphi 0, %s148
    %s166 = sphi 0, %s166
    %s168 = sphi 0, %s166
    %s169 = sphi 0, %s168
    %s183 = sphi 0, %s169
    %s191 = sphi 0, %s193
    %s194 = sphi 0, %s191
    %s195 = sphi 0, %s194
    %s211 = sphi 0, %s195
  $region4: #{model_forward.1} parent=0 // loop_header_branch
    %16 = sbr.rel (%p14) target = $region8
  $region5: #{model_forward.1} parent=0 // loop_body
    %s18 = ssub.s32 %s13, 1
    %s19 = ssub.s32 %s13, 2
    %s26 = sadd.s32 1, %s21
    %p27 = scmp.ge.s32.totalorder %s26, 1
    %s28 = scalar_select %p27, 0, %s26
    %s29 = sadd.s32 1, %s20
    %s30 = scalar_select %p27, %s29, %s20
    %p31 = scmp.ge.s32.totalorder %s30, 4
    %s32 = scalar_select %p31, 0, %s30
    %s33 = ssub.s32 %s20, %s32
    %s34 = ssub.s32 %s21, %s28
    %s35 = sor.u32 %s33, %s34
    %p36 = scmp.eq.s32.totalorder %s35, 0
    %s38 = sadd.s32 %s37, 1
    %s39 = scalar_select %p36, %s37, %s38
    %p42 = pneg %p36
    %p43 = scmp.eq.s32.totalorder %s13, 3
    %p44 = por %p42, %p43
    %p45 = scmp.ne.s32.totalorder %s37, %s40
    %p46 = scmp.eq.s32.totalorder %s13, 0
    %p47 = por %p45, %p46
    %p48 = scmp.ne.s32.totalorder %s37, %s40
    %p49 = scmp.eq.s32.totalorder %s18, 3
    %p50 = por %p48, %p49
    %p51 = scmp.ne.s32.totalorder %s40, %s41
    %p52 = scmp.eq.s32.totalorder %s18, 0
    %p53 = por %p51, %p52
    %p54 = scmp.ne.s32.totalorder %s40, %s41
    %p55 = scmp.eq.s32.totalorder %s19, 3
    %p56 = por %p54, %p55
    %p58 = scmp.ne.s32.totalorder %s41, %s57
    %p59 = scmp.eq.s32.totalorder %s19, 0
    %p60 = por %p58, %p59
    %s62 = sadd.s32 %s61, 1
    %p65 = scmp.eq.s32.totalorder %s13, 3
    %p66 = scmp.ne.s32.totalorder %s61, %s63
    %p67 = scmp.eq.s32.totalorder %s13, 0
    %p68 = por %p66, %p67
    %p69 = scmp.ne.s32.totalorder %s61, %s63
    %p70 = scmp.eq.s32.totalorder %s18, 3
    %p71 = por %p69, %p70
    %p72 = scmp.ne.s32.totalorder %s63, %s64
    %p73 = scmp.eq.s32.totalorder %s18, 0
    %p74 = por %p72, %p73
    %p75 = scmp.ne.s32.totalorder %s63, %s64
    %p76 = scmp.eq.s32.totalorder %s19, 3
    %p77 = por %p75, %p76
    %p79 = scmp.ne.s32.totalorder %s64, %s78
    %p80 = scmp.eq.s32.totalorder %s19, 0
    %p81 = por %p79, %p80
    %s83 = sadd.s32 %s82, 1
    %p86 = scmp.eq.s32.totalorder %s13, 3
    %p87 = scmp.ne.s32.totalorder %s82, %s84
    %p88 = scmp.eq.s32.totalorder %s13, 0
    %p89 = por %p87, %p88
    %p90 = scmp.ne.s32.totalorder %s82, %s84
    %p91 = scmp.eq.s32.totalorder %s18, 3
    %p92 = por %p90, %p91
    %p93 = scmp.ne.s32.totalorder %s84, %s85
    %p94 = scmp.eq.s32.totalorder %s18, 0
    %p95 = por %p93, %p94
    %p96 = scmp.ne.s32.totalorder %s84, %s85
    %p97 = scmp.eq.s32.totalorder %s19, 3
    %p98 = por %p96, %p97
    %p100 = scmp.ne.s32.totalorder %s85, %s99
    %p101 = scmp.eq.s32.totalorder %s19, 0
    %p102 = por %p100, %p101
    %s104 = sadd.s32 %s103, 1
    %p107 = scmp.eq.s32.totalorder %s13, 3
    %p108 = scmp.ne.s32.totalorder %s103, %s105
    %p109 = scmp.eq.s32.totalorder %s13, 0
    %p110 = por %p108, %p109
    %p111 = scmp.ne.s32.totalorder %s103, %s105
    %p112 = scmp.eq.s32.totalorder %s18, 3
    %p113 = por %p111, %p112
    %p114 = scmp.ne.s32.totalorder %s105, %s106
    %p115 = scmp.eq.s32.totalorder %s18, 0
    %p116 = por %p114, %p115
    %p117 = scmp.ne.s32.totalorder %s105, %s106
    %p118 = scmp.eq.s32.totalorder %s19, 3
    %p119 = por %p117, %p118
    %p121 = scmp.ne.s32.totalorder %s106, %s120
    %p122 = scmp.eq.s32.totalorder %s19, 0
    %p123 = por %p121, %p122
    %s125 = sadd.s32 %s124, 1
    %p128 = scmp.eq.s32.totalorder %s13, 3
    %p129 = scmp.ne.s32.totalorder %s124, %s126
    %p130 = scmp.eq.s32.totalorder %s13, 0
    %p131 = por %p129, %p130
    %p132 = scmp.ne.s32.totalorder %s124, %s126
    %p133 = scmp.eq.s32.totalorder %s18, 3
    %p134 = por %p132, %p133
    %p135 = scmp.ne.s32.totalorder %s126, %s127
    %p136 = scmp.eq.s32.totalorder %s18, 0
    %p137 = por %p135, %p136
    %p138 = scmp.ne.s32.totalorder %s126, %s127
    %p139 = scmp.eq.s32.totalorder %s19, 3
    %p140 = por %p138, %p139
    %p142 = scmp.ne.s32.totalorder %s127, %s141
    %p143 = scmp.eq.s32.totalorder %s19, 0
    %p144 = por %p142, %p143
    %s146 = sadd.s32 %s145, 1
    %p149 = scmp.eq.s32.totalorder %s13, 3
    %p150 = scmp.ne.s32.totalorder %s145, %s147
    %p151 = scmp.eq.s32.totalorder %s13, 0
    %p152 = por %p150, %p151
    %p153 = scmp.ne.s32.totalorder %s145, %s147
    %p154 = scmp.eq.s32.totalorder %s18, 3
    %p155 = por %p153, %p154
    %p156 = scmp.ne.s32.totalorder %s147, %s148
    %p157 = scmp.eq.s32.totalorder %s18, 0
    %p158 = por %p156, %p157
    %p159 = scmp.ne.s32.totalorder %s147, %s148
    %p160 = scmp.eq.s32.totalorder %s19, 3
    %p161 = por %p159, %p160
    %p163 = scmp.ne.s32.totalorder %s148, %s162
    %p164 = scmp.eq.s32.totalorder %s19, 0
    %p165 = por %p163, %p164
    %s167 = sadd.s32 %s166, 1
    %p170 = scmp.eq.s32.totalorder %s13, 3
    %p171 = scmp.ne.s32.totalorder %s166, %s168
    %p172 = scmp.eq.s32.totalorder %s13, 0
    %p173 = por %p171, %p172
    %p174 = scmp.ne.s32.totalorder %s166, %s168
    %p175 = scmp.eq.s32.totalorder %s18, 3
    %p176 = por %p174, %p175
    %p177 = scmp.ne.s32.totalorder %s168, %s169
    %p178 = scmp.eq.s32.totalorder %s18, 0
    %p179 = por %p177, %p178
    %p180 = scmp.ne.s32.totalorder %s168, %s169
    %p181 = scmp.eq.s32.totalorder %s19, 3
    %p182 = por %p180, %p181
    %p184 = scmp.ne.s32.totalorder %s169, %s183
    %p185 = scmp.eq.s32.totalorder %s19, 0
    %p186 = por %p184, %p185
    %s187 = ssub.s32 %s20, %s32
    %s188 = ssub.s32 %s21, %s28
    %s189 = sor.u32 %s187, %s188
    %p190 = scmp.eq.s32.totalorder %s189, 0
    %s192 = sadd.s32 %s191, 1
    %s193 = scalar_select %p190, %s191, %s192
    %p196 = pneg %p190
    %p197 = scmp.eq.s32.totalorder %s13, 3
    %p198 = por %p196, %p197
    %p199 = scmp.ne.s32.totalorder %s191, %s194
    %p200 = scmp.eq.s32.totalorder %s13, 0
    %p201 = por %p199, %p200
    %p202 = scmp.ne.s32.totalorder %s191, %s194
    %p203 = scmp.eq.s32.totalorder %s18, 3
    %p204 = por %p202, %p203
    %p205 = scmp.ne.s32.totalorder %s194, %s195
    %p206 = scmp.eq.s32.totalorder %s18, 0
    %p207 = por %p205, %p206
    %p208 = scmp.ne.s32.totalorder %s194, %s195
    %p209 = scmp.eq.s32.totalorder %s19, 3
    %p210 = por %p208, %p209
    %p212 = scmp.ne.s32.totalorder %s195, %s211
    %p213 = scmp.eq.s32.totalorder %s19, 0
    %p214 = por %p212, %p213
    %p215 = scmp.le.s32.totalorder 1, %s13
    %p216 = scmp.lt.s32.totalorder %s13, 5
    %p217 = pnand %p215, %p216
    %p218 = pneg %p217
    // Predicated region
    $region9: #{model_forward.1} parent=5 // pred_check
      _
    $region10: #{model_forward.1} parent=5 // pred_check_branch
      %220 = sbr.rel (%p217) target = $region12
    $region11: #{model_forward.1} parent=5 // pred_region
      %s221 = ssub.s32 %s13, 1
      // Predicated region
      $region13: #{model_forward.1} parent=11 // pred_check
        %p222 = pneg %p74
      $region14: #{model_forward.1} parent=11 // pred_check_branch
        %224 = sbr.rel (%p222) target = $region16
      $region15: #{model_forward.1} parent=11 // pred_region
        _
      $region16: #{model_forward.1} parent=11 // pred_fallthru
        _
      // Predicated region
      $region17: #{model_forward.1} parent=11 // pred_check
        %p225 = pneg %p95
      $region18: #{model_forward.1} parent=11 // pred_check_branch
        %227 = sbr.rel (%p225) target = $region20
      $region19: #{model_forward.1} parent=11 // pred_region
        _
      $region20: #{model_forward.1} parent=11 // pred_fallthru
        _
      // Predicated region
      $region21: #{model_forward.1} parent=11 // pred_check
        %p228 = pneg %p116
      $region22: #{model_forward.1} parent=11 // pred_check_branch
        %230 = sbr.rel (%p228) target = $region24
      $region23: #{model_forward.1} parent=11 // pred_region
        _
      $region24: #{model_forward.1} parent=11 // pred_fallthru
        _
      // Predicated region
      $region25: #{model_forward.1} parent=11 // pred_check
        %p231 = pneg %p137
      $region26: #{model_forward.1} parent=11 // pred_check_branch
        %233 = sbr.rel (%p231) target = $region28
      $region27: #{model_forward.1} parent=11 // pred_region
        _
      $region28: #{model_forward.1} parent=11 // pred_fallthru
        _
      // Predicated region
      $region29: #{model_forward.1} parent=11 // pred_check
        %p234 = pneg %p158
      $region30: #{model_forward.1} parent=11 // pred_check_branch
        %236 = sbr.rel (%p234) target = $region32
      $region31: #{model_forward.1} parent=11 // pred_region
        _
      $region32: #{model_forward.1} parent=11 // pred_fallthru
        _
      // Predicated region
      $region33: #{model_forward.1} parent=11 // pred_check
        %p237 = pneg %p179
      $region34: #{model_forward.1} parent=11 // pred_check_branch
        %239 = sbr.rel (%p237) target = $region36
      $region35: #{model_forward.1} parent=11 // pred_region
        _
      $region36: #{model_forward.1} parent=11 // pred_fallthru
        _
    $region12: #{model_forward.1} parent=5 // pred_fallthru
      _
    %p240 = scmp.lt.s32.totalorder %s13, 4
    // Predicated region
    $region37: #{model_forward.1} parent=5 // pred_check
      %p241 = pneg %p240
    $region38: #{model_forward.1} parent=5 // pred_check_branch
      %243 = sbr.rel (%p241) target = $region40
    $region39: #{model_forward.1} parent=5 // pred_region
      // Predicated region
      $region41: #{model_forward.1} parent=39 // pred_check
        %p244 = pneg %p47
      $region42: #{model_forward.1} parent=39 // pred_check_branch
        %246 = sbr.rel (%p244) target = $region44
      $region43: #{model_forward.1} parent=39 // pred_region
        %p247 = scmp.lt.s32.totalorder %s20, 3
        %s248 = scalar_select %p247, %s20, 3
        %p249 = scmp.lt.s32.totalorder %s21, 0
        %s250 = scalar_select %p249, %s21, 0
        %s251 = smul.addr %s248, 64
        %s252 = sadd.s32 %s250, %s251
        %s253 = smul.addr %s252, 8
        %s254 = scalar_lea.vmem %s0, %s253
      $region44: #{model_forward.1} parent=39 // pred_fallthru
        _
    $region40: #{model_forward.1} parent=5 // pred_fallthru
      _
    %p255 = scmp.le.s32.totalorder 1, %s13
    %p256 = scmp.lt.s32.totalorder %s13, 5
    %p257 = pnand %p255, %p256
    %p258 = pneg %p257
    // Predicated region
    $region45: #{model_forward.1} parent=5 // pred_check
      _
    $region46: #{model_forward.1} parent=5 // pred_check_branch
      %260 = sbr.rel (%p257) target = $region48
    $region47: #{model_forward.1} parent=5 // pred_region
      %s261 = ssub.s32 %s13, 1
      %p262 = scmp.lt.s32.totalorder %s22, 3
      %s263 = scalar_select %p262, %s22, 3
      %p264 = scmp.lt.s32.totalorder %s23, 0
      %s265 = scalar_select %p264, %s23, 0
      %s266 = smul.addr %s263, 64
      %s267 = sadd.s32 %s265, %s266
      %s268 = smul.addr %s267, 8
      %s269 = scalar_lea.vmem %s0, %s268
      %p270 = pneg %p53
      %p271 = pneg %p50
      %p272 = pneg %p74
      %p273 = pneg %p71
      %p274 = pneg %p95
      %p275 = pneg %p92
      %p276 = pneg %p116
      %p277 = pneg %p113
      %p278 = pneg %p137
      %p279 = pneg %p134
      %p280 = pneg %p158
      %p281 = pneg %p155
      %p282 = pneg %p179
      %p283 = pneg %p176
      %p284 = pneg %p207
      %p285 = pneg %p204
      %p286 = scmp.lt.s32.totalorder %s22, 3
      %s287 = scalar_select %p286, %s22, 3
      %p288 = scmp.lt.s32.totalorder %s23, 0
      %s289 = scalar_select %p288, %s23, 0
      %s290 = sadd.s32 %s289, %s287
      %s291 = smul.addr %s290, 8
      %s292 = scalar_lea.vmem %s7, %s291
      %p293 = scmp.lt.s32.totalorder %s22, 3
      %s294 = scalar_select %p293, %s22, 3
      %p295 = scmp.lt.s32.totalorder %s23, 0
      %s296 = scalar_select %p295, %s23, 0
      %s297 = smul.addr %s294, 64
      %s298 = sadd.s32 %s296, %s297
      %s299 = smul.addr %s298, 8
      %s300 = scalar_lea.vmem %s0, %s299
      %p301 = scmp.lt.s32.totalorder %s22, 3
      %s302 = scalar_select %p301, %s22, 3
      %p303 = scmp.lt.s32.totalorder %s23, 0
      %s304 = scalar_select %p303, %s23, 0
      %s305 = sadd.s32 %s304, %s302
      %s306 = smul.addr %s305, 8
      %s307 = scalar_lea.vmem %s7, %s306
      %v309 = vld [vmem:[%s300] sm:$0xff]
      %v310 = vld [vmem:[%s300 + $0x8] sm:$0xff]
      %v311 = vld [vmem:[%s300 + $0x10] sm:$0xff]
      %v312 = vld [vmem:[%s300 + $0x18] sm:$0xff]
      %v313 = vld [vmem:[%s300 + $0x20] sm:$0xff]
      %v314 = vld [vmem:[%s300 + $0x28] sm:$0xff]
      %v315 = vld [vmem:[%s300 + $0x30] sm:$0xff]
      %v316 = vld [vmem:[%s300 + $0x38] sm:$0xff]
      %v317 = vld [vmem:[%s300 + $0x40] sm:$0xff]
      %v318 = vld [vmem:[%s300 + $0x48] sm:$0xff]
      %v319 = vld [vmem:[%s300 + $0x50] sm:$0xff]
      %v320 = vld [vmem:[%s300 + $0x58] sm:$0xff]
      %v321 = vld [vmem:[%s300 + $0x60] sm:$0xff]
      %v322 = vld [vmem:[%s300 + $0x68] sm:$0xff]
      %v323 = vld [vmem:[%s300 + $0x70] sm:$0xff]
      %v324 = vld [vmem:[%s300 + $0x78] sm:$0xff]
      %v325 = vld [vmem:[%s300 + $0x80] sm:$0xff]
      %v326 = vld [vmem:[%s300 + $0x88] sm:$0xff]
      %v327 = vld [vmem:[%s300 + $0x90] sm:$0xff]
      %v328 = vld [vmem:[%s300 + $0x98] sm:$0xff]
      %v329 = vld [vmem:[%s300 + $0xa0] sm:$0xff]
      %v330 = vld [vmem:[%s300 + $0xa8] sm:$0xff]
      %v331 = vld [vmem:[%s300 + $0xb0] sm:$0xff]
      %v332 = vld [vmem:[%s300 + $0xb8] sm:$0xff]
      %v333 = vld [vmem:[%s300 + $0xc0] sm:$0xff]
      %v334 = vld [vmem:[%s300 + $0xc8] sm:$0xff]
      %v335 = vld [vmem:[%s300 + $0xd0] sm:$0xff]
      %v336 = vld [vmem:[%s300 + $0xd8] sm:$0xff]
      %v337 = vld [vmem:[%s300 + $0xe0] sm:$0xff]
      %v338 = vld [vmem:[%s300 + $0xe8] sm:$0xff]
      %v339 = vld [vmem:[%s300 + $0xf0] sm:$0xff]
      %v340 = vld [vmem:[%s300 + $0xf8] sm:$0xff]
      %v341 = vld [vmem:[%s300 + $0x100] sm:$0xff]
      %v342 = vld [vmem:[%s300 + $0x108] sm:$0xff]
      %v343 = vld [vmem:[%s300 + $0x110] sm:$0xff]
      %v344 = vld [vmem:[%s300 + $0x118] sm:$0xff]
      %v345 = vld [vmem:[%s300 + $0x120] sm:$0xff]
      %v346 = vld [vmem:[%s300 + $0x128] sm:$0xff]
      %v347 = vld [vmem:[%s300 + $0x130] sm:$0xff]
      %v348 = vld [vmem:[%s300 + $0x138] sm:$0xff]
      %v349 = vld [vmem:[%s300 + $0x140] sm:$0xff]
      %v350 = vld [vmem:[%s300 + $0x148] sm:$0xff]
      %v351 = vld [vmem:[%s300 + $0x150] sm:$0xff]
      %v352 = vld [vmem:[%s300 + $0x158] sm:$0xff]
      %v353 = vld [vmem:[%s300 + $0x160] sm:$0xff]
      %v354 = vld [vmem:[%s300 + $0x168] sm:$0xff]
      %v355 = vld [vmem:[%s300 + $0x170] sm:$0xff]
      %v356 = vld [vmem:[%s300 + $0x178] sm:$0xff]
      %v357 = vld [vmem:[%s300 + $0x180] sm:$0xff]
      %v358 = vld [vmem:[%s300 + $0x188] sm:$0xff]
      %v359 = vld [vmem:[%s300 + $0x190] sm:$0xff]
      %v360 = vld [vmem:[%s300 + $0x198] sm:$0xff]
      %v361 = vld [vmem:[%s300 + $0x1a0] sm:$0xff]
      %v362 = vld [vmem:[%s300 + $0x1a8] sm:$0xff]
      %v363 = vld [vmem:[%s300 + $0x1b0] sm:$0xff]
      %v364 = vld [vmem:[%s300 + $0x1b8] sm:$0xff]
      %v365 = vld [vmem:[%s300 + $0x1c0] sm:$0xff]
      %v366 = vld [vmem:[%s300 + $0x1c8] sm:$0xff]
      %v367 = vld [vmem:[%s300 + $0x1d0] sm:$0xff]
      %v368 = vld [vmem:[%s300 + $0x1d8] sm:$0xff]
      %v369 = vld [vmem:[%s300 + $0x1e0] sm:$0xff]
      %v370 = vld [vmem:[%s300 + $0x1e8] sm:$0xff]
      %v371 = vld [vmem:[%s300 + $0x1f0] sm:$0xff]
      %v372 = vld [vmem:[%s300 + $0x1f8] sm:$0xff]
      %v373 = vpack.c.bf16 %v310, %v309
      %v374 = vpack.c.bf16 %v312, %v311
      %v375 = vpack.c.bf16 %v314, %v313
      %v376 = vpack.c.bf16 %v316, %v315
      %v377 = vpack.c.bf16 %v318, %v317
      %v378 = vpack.c.bf16 %v320, %v319
      %v379 = vpack.c.bf16 %v322, %v321
      %v380 = vpack.c.bf16 %v324, %v323
      %v381 = vpack.c.bf16 %v326, %v325
      %v382 = vpack.c.bf16 %v328, %v327
      %v383 = vpack.c.bf16 %v330, %v329
      %v384 = vpack.c.bf16 %v332, %v331
      %v385 = vpack.c.bf16 %v334, %v333
      %v386 = vpack.c.bf16 %v336, %v335
      %v387 = vpack.c.bf16 %v338, %v337
      %v388 = vpack.c.bf16 %v340, %v339
      %v389 = vpack.c.bf16 %v342, %v341
      %v390 = vpack.c.bf16 %v344, %v343
      %v391 = vpack.c.bf16 %v346, %v345
      %v392 = vpack.c.bf16 %v348, %v347
      %v393 = vpack.c.bf16 %v350, %v349
      %v394 = vpack.c.bf16 %v352, %v351
      %v395 = vpack.c.bf16 %v354, %v353
      %v396 = vpack.c.bf16 %v356, %v355
      %v397 = vpack.c.bf16 %v358, %v357
      %v398 = vpack.c.bf16 %v360, %v359
      %v399 = vpack.c.bf16 %v362, %v361
      %v400 = vpack.c.bf16 %v364, %v363
      %v401 = vpack.c.bf16 %v366, %v365
      %v402 = vpack.c.bf16 %v368, %v367
      %v403 = vpack.c.bf16 %v370, %v369
      %v404 = vpack.c.bf16 %v372, %v371
      %v405 = vld [vmem:[%s1] sm:$0xff]
      %v406 = vld [vmem:[%s1 + $0x8] sm:$0xff]
      %v407 = vld [vmem:[%s1 + $0x10] sm:$0xff]
      %v408 = vld [vmem:[%s1 + $0x18] sm:$0xff]
      %v409 = vld [vmem:[%s1 + $0x20] sm:$0xff]
      %v410 = vld [vmem:[%s1 + $0x28] sm:$0xff]
      %v411 = vld [vmem:[%s1 + $0x30] sm:$0xff]
      %v412 = vld [vmem:[%s1 + $0x38] sm:$0xff]
      %v413 = vld [vmem:[%s1 + $0x40] sm:$0xff]
      %v414 = vld [vmem:[%s1 + $0x48] sm:$0xff]
      %v415 = vld [vmem:[%s1 + $0x50] sm:$0xff]
      %v416 = vld [vmem:[%s1 + $0x58] sm:$0xff]
      %v417 = vld [vmem:[%s1 + $0x60] sm:$0xff]
      %v418 = vld [vmem:[%s1 + $0x68] sm:$0xff]
      %v419 = vld [vmem:[%s1 + $0x70] sm:$0xff]
      %v420 = vld [vmem:[%s1 + $0x78] sm:$0xff]
      %v421 = vld [vmem:[%s1 + $0x80] sm:$0xff]
      %v422 = vld [vmem:[%s1 + $0x88] sm:$0xff]
      %v423 = vld [vmem:[%s1 + $0x90] sm:$0xff]
      %v424 = vld [vmem:[%s1 + $0x98] sm:$0xff]
      %v425 = vld [vmem:[%s1 + $0xa0] sm:$0xff]
      %v426 = vld [vmem:[%s1 + $0xa8] sm:$0xff]
      %v427 = vld [vmem:[%s1 + $0xb0] sm:$0xff]
      %v428 = vld [vmem:[%s1 + $0xb8] sm:$0xff]
      %v429 = vld [vmem:[%s1 + $0xc0] sm:$0xff]
      %v430 = vld [vmem:[%s1 + $0xc8] sm:$0xff]
      %v431 = vld [vmem:[%s1 + $0xd0] sm:$0xff]
      %v432 = vld [vmem:[%s1 + $0xd8] sm:$0xff]
      %v433 = vld [vmem:[%s1 + $0xe0] sm:$0xff]
      %v434 = vld [vmem:[%s1 + $0xe8] sm:$0xff]
      %v435 = vld [vmem:[%s1 + $0xf0] sm:$0xff]
      %v436 = vld [vmem:[%s1 + $0xf8] sm:$0xff]
      %v437 = vld [vmem:[%s1 + $0x100] sm:$0xff]
      %v438 = vld [vmem:[%s1 + $0x108] sm:$0xff]
      %v439 = vld [vmem:[%s1 + $0x110] sm:$0xff]
      %v440 = vld [vmem:[%s1 + $0x118] sm:$0xff]
      %v441 = vld [vmem:[%s1 + $0x120] sm:$0xff]
      %v442 = vld [vmem:[%s1 + $0x128] sm:$0xff]
      %v443 = vld [vmem:[%s1 + $0x130] sm:$0xff]
      %v444 = vld [vmem:[%s1 + $0x138] sm:$0xff]
      %v445 = vld [vmem:[%s1 + $0x140] sm:$0xff]
      %v446 = vld [vmem:[%s1 + $0x148] sm:$0xff]
      %v447 = vld [vmem:[%s1 + $0x150] sm:$0xff]
      %v448 = vld [vmem:[%s1 + $0x158] sm:$0xff]
      %v449 = vld [vmem:[%s1 + $0x160] sm:$0xff]
      %v450 = vld [vmem:[%s1 + $0x168] sm:$0xff]
      %v451 = vld [vmem:[%s1 + $0x170] sm:$0xff]
      %v452 = vld [vmem:[%s1 + $0x178] sm:$0xff]
      %v453 = vld [vmem:[%s1 + $0x180] sm:$0xff]
      %v454 = vld [vmem:[%s1 + $0x188] sm:$0xff]
      %v455 = vld [vmem:[%s1 + $0x190] sm:$0xff]
      %v456 = vld [vmem:[%s1 + $0x198] sm:$0xff]
      %v457 = vld [vmem:[%s1 + $0x1a0] sm:$0xff]
      %v458 = vld [vmem:[%s1 + $0x1a8] sm:$0xff]
      %v459 = vld [vmem:[%s1 + $0x1b0] sm:$0xff]
      %v460 = vld [vmem:[%s1 + $0x1b8] sm:$0xff]
      %v461 = vld [vmem:[%s1 + $0x1c0] sm:$0xff]
      %v462 = vld [vmem:[%s1 + $0x1c8] sm:$0xff]
      %v463 = vld [vmem:[%s1 + $0x1d0] sm:$0xff]
      %v464 = vld [vmem:[%s1 + $0x1d8] sm:$0xff]
      %v465 = vld [vmem:[%s1 + $0x1e0] sm:$0xff]
      %v466 = vld [vmem:[%s1 + $0x1e8] sm:$0xff]
      %v467 = vld [vmem:[%s1 + $0x1f0] sm:$0xff]
      %v468 = vld [vmem:[%s1 + $0x1f8] sm:$0xff]
      %v469 = vld [vmem:[%s2] sm:$0xff]
      %v470 = vld [vmem:[%s2 + $0x8] sm:$0xff]
      %v471 = vld [vmem:[%s2 + $0x10] sm:$0xff]
      %v472 = vld [vmem:[%s2 + $0x18] sm:$0xff]
      %v473 = vld [vmem:[%s2 + $0x20] sm:$0xff]
      %v474 = vld [vmem:[%s2 + $0x28] sm:$0xff]
      %v475 = vld [vmem:[%s2 + $0x30] sm:$0xff]
      %v476 = vld [vmem:[%s2 + $0x38] sm:$0xff]
      %v477 = vld [vmem:[%s2 + $0x40] sm:$0xff]
      %v478 = vld [vmem:[%s2 + $0x48] sm:$0xff]
      %v479 = vld [vmem:[%s2 + $0x50] sm:$0xff]
      %v480 = vld [vmem:[%s2 + $0x58] sm:$0xff]
      %v481 = vld [vmem:[%s2 + $0x60] sm:$0xff]
      %v482 = vld [vmem:[%s2 + $0x68] sm:$0xff]
      %v483 = vld [vmem:[%s2 + $0x70] sm:$0xff]
      %v484 = vld [vmem:[%s2 + $0x78] sm:$0xff]
      %v485 = vld [vmem:[%s2 + $0x80] sm:$0xff]
      %v486 = vld [vmem:[%s2 + $0x88] sm:$0xff]
      %v487 = vld [vmem:[%s2 + $0x90] sm:$0xff]
      %v488 = vld [vmem:[%s2 + $0x98] sm:$0xff]
      %v489 = vld [vmem:[%s2 + $0xa0] sm:$0xff]
      %v490 = vld [vmem:[%s2 + $0xa8] sm:$0xff]
      %v491 = vld [vmem:[%s2 + $0xb0] sm:$0xff]
      %v492 = vld [vmem:[%s2 + $0xb8] sm:$0xff]
      %v493 = vld [vmem:[%s2 + $0xc0] sm:$0xff]
      %v494 = vld [vmem:[%s2 + $0xc8] sm:$0xff]
      %v495 = vld [vmem:[%s2 + $0xd0] sm:$0xff]
      %v496 = vld [vmem:[%s2 + $0xd8] sm:$0xff]
      %v497 = vld [vmem:[%s2 + $0xe0] sm:$0xff]
      %v498 = vld [vmem:[%s2 + $0xe8] sm:$0xff]
      %v499 = vld [vmem:[%s2 + $0xf0] sm:$0xff]
      %v500 = vld [vmem:[%s2 + $0xf8] sm:$0xff]
      %502 = vset.pattern.permute.xlu0 0
      %503 = vperm.xlu0 %502, %v469
      %v504 = vpop.permute.xlu0 %503
      %507 = vset.pattern.permute.xlu0 0
      %508 = vperm.xlu0 %507, %v470
      %v509 = vpop.permute.xlu0 %508
      %512 = vset.pattern.permute.xlu0 0
      %513 = vperm.xlu0 %512, %v471
      %v514 = vpop.permute.xlu0 %513
      %517 = vset.pattern.permute.xlu0 0
      %518 = vperm.xlu0 %517, %v472
      %v519 = vpop.permute.xlu0 %518
      %522 = vset.pattern.permute.xlu0 0
      %523 = vperm.xlu0 %522, %v473
      %v524 = vpop.permute.xlu0 %523
      %527 = vset.pattern.permute.xlu0 0
      %528 = vperm.xlu0 %527, %v474
      %v529 = vpop.permute.xlu0 %528
      %532 = vset.pattern.permute.xlu0 0
      %533 = vperm.xlu0 %532, %v475
      %v534 = vpop.permute.xlu0 %533
      %537 = vset.pattern.permute.xlu0 0
      %538 = vperm.xlu0 %537, %v476
      %v539 = vpop.permute.xlu0 %538
      %542 = vset.pattern.permute.xlu0 0
      %543 = vperm.xlu0 %542, %v477
      %v544 = vpop.permute.xlu0 %543
      %547 = vset.pattern.permute.xlu0 0
      %548 = vperm.xlu0 %547, %v478
      %v549 = vpop.permute.xlu0 %548
      %552 = vset.pattern.permute.xlu0 0
      %553 = vperm.xlu0 %552, %v479
      %v554 = vpop.permute.xlu0 %553
      %557 = vset.pattern.permute.xlu0 0
      %558 = vperm.xlu0 %557, %v480
      %v559 = vpop.permute.xlu0 %558
      %562 = vset.pattern.permute.xlu0 0
      %563 = vperm.xlu0 %562, %v481
      %v564 = vpop.permute.xlu0 %563
      %567 = vset.pattern.permute.xlu0 0
      %568 = vperm.xlu0 %567, %v482
      %v569 = vpop.permute.xlu0 %568
      %572 = vset.pattern.permute.xlu0 0
      %573 = vperm.xlu0 %572, %v483
      %v574 = vpop.permute.xlu0 %573
      %577 = vset.pattern.permute.xlu0 0
      %578 = vperm.xlu0 %577, %v484
      %v579 = vpop.permute.xlu0 %578
      %582 = vset.pattern.permute.xlu0 0
      %583 = vperm.xlu0 %582, %v485
      %v584 = vpop.permute.xlu0 %583
      %587 = vset.pattern.permute.xlu0 0
      %588 = vperm.xlu0 %587, %v486
      %v589 = vpop.permute.xlu0 %588
      %592 = vset.pattern.permute.xlu0 0
      %593 = vperm.xlu0 %592, %v487
      %v594 = vpop.permute.xlu0 %593
      %597 = vset.pattern.permute.xlu0 0
      %598 = vperm.xlu0 %597, %v488
      %v599 = vpop.permute.xlu0 %598
      %602 = vset.pattern.permute.xlu0 0
      %603 = vperm.xlu0 %602, %v489
      %v604 = vpop.permute.xlu0 %603
      %607 = vset.pattern.permute.xlu0 0
      %608 = vperm.xlu0 %607, %v490
      %v609 = vpop.permute.xlu0 %608
      %612 = vset.pattern.permute.xlu0 0
      %613 = vperm.xlu0 %612, %v491
      %v614 = vpop.permute.xlu0 %613
      %617 = vset.pattern.permute.xlu0 0
      %618 = vperm.xlu0 %617, %v492
      %v619 = vpop.permute.xlu0 %618
      %622 = vset.pattern.permute.xlu0 0
      %623 = vperm.xlu0 %622, %v493
      %v624 = vpop.permute.xlu0 %623
      %627 = vset.pattern.permute.xlu0 0
      %628 = vperm.xlu0 %627, %v494
      %v629 = vpop.permute.xlu0 %628
      %632 = vset.pattern.permute.xlu0 0
      %633 = vperm.xlu0 %632, %v495
      %v634 = vpop.permute.xlu0 %633
      %637 = vset.pattern.permute.xlu0 0
      %638 = vperm.xlu0 %637, %v496
      %v639 = vpop.permute.xlu0 %638
      %642 = vset.pattern.permute.xlu0 0
      %643 = vperm.xlu0 %642, %v497
      %v644 = vpop.permute.xlu0 %643
      %647 = vset.pattern.permute.xlu0 0
      %648 = vperm.xlu0 %647, %v498
      %v649 = vpop.permute.xlu0 %648
      %652 = vset.pattern.permute.xlu0 0
      %653 = vperm.xlu0 %652, %v499
      %v654 = vpop.permute.xlu0 %653
      %657 = vset.pattern.permute.xlu0 0
      %658 = vperm.xlu0 %657, %v500
      %v659 = vpop.permute.xlu0 %658
      %v725 = vunpack.c.l.b16 %v405
      %v726 = vunpack.c.h.b16 %v405
      %v727 = vunpack.c.l.b16 %v406
      %v728 = vunpack.c.h.b16 %v406
      %v729 = vunpack.c.l.b16 %v407
      %v730 = vunpack.c.h.b16 %v407
      %v731 = vunpack.c.l.b16 %v408
      %v732 = vunpack.c.h.b16 %v408
      %v733 = vunpack.c.l.b16 %v409
      %v734 = vunpack.c.h.b16 %v409
      %v735 = vunpack.c.l.b16 %v410
      %v736 = vunpack.c.h.b16 %v410
      %v737 = vunpack.c.l.b16 %v411
      %v738 = vunpack.c.h.b16 %v411
      %v739 = vunpack.c.l.b16 %v412
      %v740 = vunpack.c.h.b16 %v412
      %v741 = vunpack.c.l.b16 %v413
      %v742 = vunpack.c.h.b16 %v413
      %v743 = vunpack.c.l.b16 %v414
      %v744 = vunpack.c.h.b16 %v414
      %v745 = vunpack.c.l.b16 %v415
      %v746 = vunpack.c.h.b16 %v415
      %v747 = vunpack.c.l.b16 %v416
      %v748 = vunpack.c.h.b16 %v416
      %v749 = vunpack.c.l.b16 %v417
      %v750 = vunpack.c.h.b16 %v417
      %v751 = vunpack.c.l.b16 %v418
      %v752 = vunpack.c.h.b16 %v418
      %v753 = vunpack.c.l.b16 %v419
      %v754 = vunpack.c.h.b16 %v419
      %v755 = vunpack.c.l.b16 %v420
      %v756 = vunpack.c.h.b16 %v420
      %v757 = vunpack.c.l.b16 %v421
      %v758 = vunpack.c.h.b16 %v421
      %v759 = vunpack.c.l.b16 %v422
      %v760 = vunpack.c.h.b16 %v422
      %v761 = vunpack.c.l.b16 %v423
      %v762 = vunpack.c.h.b16 %v423
      %v763 = vunpack.c.l.b16 %v424
      %v764 = vunpack.c.h.b16 %v424
      %v765 = vunpack.c.l.b16 %v425
      %v766 = vunpack.c.h.b16 %v425
      %v767 = vunpack.c.l.b16 %v426
      %v768 = vunpack.c.h.b16 %v426
      %v769 = vunpack.c.l.b16 %v427
      %v770 = vunpack.c.h.b16 %v427
      %v771 = vunpack.c.l.b16 %v428
      %v772 = vunpack.c.h.b16 %v428
      %v773 = vunpack.c.l.b16 %v429
      %v774 = vunpack.c.h.b16 %v429
      %v775 = vunpack.c.l.b16 %v430
      %v776 = vunpack.c.h.b16 %v430
      %v777 = vunpack.c.l.b16 %v431
      %v778 = vunpack.c.h.b16 %v431
      %v779 = vunpack.c.l.b16 %v432
      %v780 = vunpack.c.h.b16 %v432
      %v781 = vunpack.c.l.b16 %v433
      %v782 = vunpack.c.h.b16 %v433
      %v783 = vunpack.c.l.b16 %v434
      %v784 = vunpack.c.h.b16 %v434
      %v785 = vunpack.c.l.b16 %v435
      %v786 = vunpack.c.h.b16 %v435
      %v787 = vunpack.c.l.b16 %v436
      %v788 = vunpack.c.h.b16 %v436
      %v789 = vunpack.c.l.b16 %v437
      %v790 = vunpack.c.h.b16 %v437
      %v791 = vunpack.c.l.b16 %v438
      %v792 = vunpack.c.h.b16 %v438
      %v793 = vunpack.c.l.b16 %v439
      %v794 = vunpack.c.h.b16 %v439
      %v795 = vunpack.c.l.b16 %v440
      %v796 = vunpack.c.h.b16 %v440
      %v797 = vunpack.c.l.b16 %v441
      %v798 = vunpack.c.h.b16 %v441
      %v799 = vunpack.c.l.b16 %v442
      %v800 = vunpack.c.h.b16 %v442
      %v801 = vunpack.c.l.b16 %v443
      %v802 = vunpack.c.h.b16 %v443
      %v803 = vunpack.c.l.b16 %v444
      %v804 = vunpack.c.h.b16 %v444
      %v805 = vunpack.c.l.b16 %v445
      %v806 = vunpack.c.h.b16 %v445
      %v807 = vunpack.c.l.b16 %v446
      %v808 = vunpack.c.h.b16 %v446
      %v809 = vunpack.c.l.b16 %v447
      %v810 = vunpack.c.h.b16 %v447
      %v811 = vunpack.c.l.b16 %v448
      %v812 = vunpack.c.h.b16 %v448
      %v813 = vunpack.c.l.b16 %v449
      %v814 = vunpack.c.h.b16 %v449
      %v815 = vunpack.c.l.b16 %v450
      %v816 = vunpack.c.h.b16 %v450
      %v817 = vunpack.c.l.b16 %v451
      %v818 = vunpack.c.h.b16 %v451
      %v819 = vunpack.c.l.b16 %v452
      %v820 = vunpack.c.h.b16 %v452
      %v821 = vunpack.c.l.b16 %v453
      %v822 = vunpack.c.h.b16 %v453
      %v823 = vunpack.c.l.b16 %v454
      %v824 = vunpack.c.h.b16 %v454
      %v825 = vunpack.c.l.b16 %v455
      %v826 = vunpack.c.h.b16 %v455
      %v827 = vunpack.c.l.b16 %v456
      %v828 = vunpack.c.h.b16 %v456
      %v829 = vunpack.c.l.b16 %v457
      %v830 = vunpack.c.h.b16 %v457
      %v831 = vunpack.c.l.b16 %v458
      %v832 = vunpack.c.h.b16 %v458
      %v833 = vunpack.c.l.b16 %v459
      %v834 = vunpack.c.h.b16 %v459
      %v835 = vunpack.c.l.b16 %v460
      %v836 = vunpack.c.h.b16 %v460
      %v837 = vunpack.c.l.b16 %v461
      %v838 = vunpack.c.h.b16 %v461
      %v839 = vunpack.c.l.b16 %v462
      %v840 = vunpack.c.h.b16 %v462
      %v841 = vunpack.c.l.b16 %v463
      %v842 = vunpack.c.h.b16 %v463
      %v843 = vunpack.c.l.b16 %v464
      %v844 = vunpack.c.h.b16 %v464
      %v845 = vunpack.c.l.b16 %v465
      %v846 = vunpack.c.h.b16 %v465
      %v847 = vunpack.c.l.b16 %v466
      %v848 = vunpack.c.h.b16 %v466
      %v849 = vunpack.c.l.b16 %v467
      %v850 = vunpack.c.h.b16 %v467
      %v851 = vunpack.c.l.b16 %v468
      %v852 = vunpack.c.h.b16 %v468
      %v853 = vpack.c.b16 %v729, %v725
      %v854 = vpack.c.b16 %v730, %v726
      %v855 = vpack.c.b16 %v731, %v727
      %v856 = vpack.c.b16 %v732, %v728
      %v857 = vpack.c.b16 %v737, %v733
      %v858 = vpack.c.b16 %v738, %v734
      %v859 = vpack.c.b16 %v739, %v735
      %v860 = vpack.c.b16 %v740, %v736
      %v861 = vpack.c.b16 %v745, %v741
      %v862 = vpack.c.b16 %v746, %v742
      %v863 = vpack.c.b16 %v747, %v743
      %v864 = vpack.c.b16 %v748, %v744
      %v865 = vpack.c.b16 %v753, %v749
      %v866 = vpack.c.b16 %v754, %v750
      %v867 = vpack.c.b16 %v755, %v751
      %v868 = vpack.c.b16 %v756, %v752
      %v869 = vpack.c.b16 %v761, %v757
      %v870 = vpack.c.b16 %v762, %v758
      %v871 = vpack.c.b16 %v763, %v759
      %v872 = vpack.c.b16 %v764, %v760
      %v873 = vpack.c.b16 %v769, %v765
      %v874 = vpack.c.b16 %v770, %v766
      %v875 = vpack.c.b16 %v771, %v767
      %v876 = vpack.c.b16 %v772, %v768
      %v877 = vpack.c.b16 %v777, %v773
      %v878 = vpack.c.b16 %v778, %v774
      %v879 = vpack.c.b16 %v779, %v775
      %v880 = vpack.c.b16 %v780, %v776
      %v881 = vpack.c.b16 %v785, %v781
      %v882 = vpack.c.b16 %v786, %v782
      %v883 = vpack.c.b16 %v787, %v783
      %v884 = vpack.c.b16 %v788, %v784
      %v885 = vpack.c.b16 %v793, %v789
      %v886 = vpack.c.b16 %v794, %v790
      %v887 = vpack.c.b16 %v795, %v791
      %v888 = vpack.c.b16 %v796, %v792
      %v889 = vpack.c.b16 %v801, %v797
      %v890 = vpack.c.b16 %v802, %v798
      %v891 = vpack.c.b16 %v803, %v799
      %v892 = vpack.c.b16 %v804, %v800
      %v893 = vpack.c.b16 %v809, %v805
      %v894 = vpack.c.b16 %v810, %v806
      %v895 = vpack.c.b16 %v811, %v807
      %v896 = vpack.c.b16 %v812, %v808
      %v897 = vpack.c.b16 %v817, %v813
      %v898 = vpack.c.b16 %v818, %v814
      %v899 = vpack.c.b16 %v819, %v815
      %v900 = vpack.c.b16 %v820, %v816
      %v901 = vpack.c.b16 %v825, %v821
      %v902 = vpack.c.b16 %v826, %v822
      %v903 = vpack.c.b16 %v827, %v823
      %v904 = vpack.c.b16 %v828, %v824
      %v905 = vpack.c.b16 %v833, %v829
      %v906 = vpack.c.b16 %v834, %v830
      %v907 = vpack.c.b16 %v835, %v831
      %v908 = vpack.c.b16 %v836, %v832
      %v909 = vpack.c.b16 %v841, %v837
      %v910 = vpack.c.b16 %v842, %v838
      %v911 = vpack.c.b16 %v843, %v839
      %v912 = vpack.c.b16 %v844, %v840
      %v913 = vpack.c.b16 %v849, %v845
      %v914 = vpack.c.b16 %v850, %v846
      %v915 = vpack.c.b16 %v851, %v847
      %v916 = vpack.c.b16 %v852, %v848
      %981 = vmatprep.subr.bf16.mxu0 0
      %982 = vmatpush1.bf16.msra.mxu0 %v373
      %983 = vmatprep.subr.bf16.mxu0 0
      %984 = vmatpush1.bf16.msra.mxu0 %v374
      %985 = vmatprep.subr.bf16.mxu0 0
      %986 = vmatpush1.bf16.msra.mxu0 %v375
      %987 = vmatprep.subr.bf16.mxu0 0
      %988 = vmatpush1.bf16.msra.mxu0 %v376
      %989 = vmatprep.subr.bf16.mxu0 0
      %990 = vmatpush1.bf16.msra.mxu0 %v377
      %991 = vmatprep.subr.bf16.mxu0 0
      %992 = vmatpush1.bf16.msra.mxu0 %v378
      %993 = vmatprep.subr.bf16.mxu0 0
      %994 = vmatpush1.bf16.msra.mxu0 %v379
      %995 = vmatprep.subr.bf16.mxu0 0
      %996 = vmatpush1.bf16.msra.mxu0 %v380
      %997 = vmatprep.subr.bf16.mxu0 0
      %998 = vmatpush1.bf16.msra.mxu0 %v381
      %999 = vmatprep.subr.bf16.mxu0 0
      %1000 = vmatpush1.bf16.msra.mxu0 %v382
      %1001 = vmatprep.subr.bf16.mxu0 0
      %1002 = vmatpush1.bf16.msra.mxu0 %v383
      %1003 = vmatprep.subr.bf16.mxu0 0
      %1004 = vmatpush1.bf16.msra.mxu0 %v384
      %1005 = vmatprep.subr.bf16.mxu0 0
      %1006 = vmatpush1.bf16.msra.mxu0 %v385
      %1007 = vmatprep.subr.bf16.mxu0 0
      %1008 = vmatpush1.bf16.msra.mxu0 %v386
      %1009 = vmatprep.subr.bf16.mxu0 0
      %1010 = vmatpush1.bf16.msra.mxu0 %v387
      %1011 = vmatprep.subr.bf16.mxu0 0
      %1012 = vmatpush1.bf16.msra.mxu0 %v388
      %1013 = vmatprep.mubr.bf16.mxu0 %v854
      %1014 = vmatmul.mubr.bf16.gmra.mrb[0].mxu0 %v853
      %v1015 = vpop.f32.mrb[0].mxu0
      %v1016 = vadd.f32 %v504, %v1015
      %v1017 = vpop.f32.mrb[0].mxu0
      %v1018 = vpop.f32.mrb[0].mxu0
      %v1019 = vadd.f32 %v509, %v1018
      %v1020 = vpop.f32.mrb[0].mxu0
      %1021 = vmatprep.mubr.bf16.mxu0 %v858
      %1022 = vmatmul.mubr.bf16.gmra.mrb[0].mxu0 %v857
      %v1023 = vpop.f32.mrb[0].mxu0
      %v1024 = vadd.f32 %v514, %v1023
      %v1025 = vpop.f32.mrb[0].mxu0
      %v1026 = vpop.f32.mrb[0].mxu0
      %v1027 = vadd.f32 %v519, %v1026
      %v1028 = vpop.f32.mrb[0].mxu0
      %1029 = vmatprep.mubr.bf16.mxu0 %v862
      %1030 = vmatmul.mubr.bf16.gmra.mrb[0].mxu0 %v861
      %v1031 = vpop.f32.mrb[0].mxu0
      %v1032 = vadd.f32 %v524, %v1031
      %v1033 = vpop.f32.mrb[0].mxu0
      %v1034 = vpop.f32.mrb[0].mxu0
      %v1035 = vadd.f32 %v529, %v1034
      %v1036 = vpop.f32.mrb[0].mxu0
      %1037 = vmatprep.mubr.bf16.mxu0 %v866
      %1038 = vmatmul.mubr.bf16.gmra.mrb[0].mxu0 %v865
      %v1039 = vpop.f32.mrb[0].mxu0
      %v1040 = vadd.f32 %v534, %v1039
      %v1041 = vpop.f32.mrb[0].mxu0
      %v1042 = vpop.f32.mrb[0].mxu0
      %v1043 = vadd.f32 %v539, %v1042
      %v1044 = vpop.f32.mrb[0].mxu0
      %1045 = vmatprep.mubr.bf16.mxu0 %v870
      %1046 = vmatmul.mubr.bf16.gmra.mrb[0].mxu0 %v869
      %v1047 = vpop.f32.mrb[0].mxu0
      %v1048 = vadd.f32 %v544, %v1047
      %v1049 = vpop.f32.mrb[0].mxu0
      %v1050 = vpop.f32.mrb[0].mxu0
      %v1051 = vadd.f32 %v549, %v1050
      %v1052 = vpop.f32.mrb[0].mxu0
      %1053 = vmatprep.mubr.bf16.mxu0 %v874
      %1054 = vmatmul.mubr.bf16.gmra.mrb[0].mxu0 %v873
      %v1055 = vpop.f32.mrb[0].mxu0
      %v1056 = vadd.f32 %v554, %v1055
      %v1057 = vpop.f32.mrb[0].mxu0
      %v1058 = vpop.f32.mrb[0].mxu0
      %v1059 = vadd.f32 %v559, %v1058
      %v1060 = vpop.f32.mrb[0].mxu0
      %1061 = vmatprep.mubr.bf16.mxu0 %v878
      %1062 = vmatmul.mubr.bf16.gmra.mrb[0].mxu0 %v877
      %v1063 = vpop.f32.mrb[0].mxu0
      %v1064 = vadd.f32 %v564, %v1063
      %v1065 = vpop.f32.mrb[0].mxu0
      %v1066 = vpop.f32.mrb[0].mxu0
      %v1067 = vadd.f32 %v569, %v1066
      %v1068 = vpop.f32.mrb[0].mxu0
      %1069 = vmatprep.mubr.bf16.mxu0 %v882
      %1070 = vmatmul.mubr.bf16.gmra.mrb[0].mxu0 %v881
      %v1071 = vpop.f32.mrb[0].mxu0
      %v1072 = vadd.f32 %v574, %v1071
      %v1073 = vpop.f32.mrb[0].mxu0
      %v1074 = vpop.f32.mrb[0].mxu0
      %v1075 = vadd.f32 %v579, %v1074
      %v1076 = vpop.f32.mrb[0].mxu0
      %1077 = vmatprep.mubr.bf16.mxu0 %v886
      %1078 = vmatmul.mubr.bf16.gmra.mrb[0].mxu0 %v885
      %v1079 = vpop.f32.mrb[0].mxu0
      %v1080 = vadd.f32 %v584, %v1079
      %v1081 = vpop.f32.mrb[0].mxu0
      %v1082 = vpop.f32.mrb[0].mxu0
      %v1083 = vadd.f32 %v589, %v1082
      %v1084 = vpop.f32.mrb[0].mxu0
      %1085 = vmatprep.mubr.bf16.mxu0 %v890
      %1086 = vmatmul.mubr.bf16.gmra.mrb[0].mxu0 %v889
      %v1087 = vpop.f32.mrb[0].mxu0
      %v1088 = vadd.f32 %v594, %v1087
      %v1089 = vpop.f32.mrb[0].mxu0
      %v1090 = vpop.f32.mrb[0].mxu0
      %v1091 = vadd.f32 %v599, %v1090
      %v1092 = vpop.f32.mrb[0].mxu0
      %1093 = vmatprep.mubr.bf16.mxu0 %v894
      %1094 = vmatmul.mubr.bf16.gmra.mrb[0].mxu0 %v893
      %v1095 = vpop.f32.mrb[0].mxu0
      %v1096 = vadd.f32 %v604, %v1095
      %v1097 = vpop.f32.mrb[0].mxu0
      %v1098 = vpop.f32.mrb[0].mxu0
      %v1099 = vadd.f32 %v609, %v1098
      %v1100 = vpop.f32.mrb[0].mxu0
      %1101 = vmatprep.mubr.bf16.mxu0 %v898
      %1102 = vmatmul.mubr.bf16.gmra.mrb[0].mxu0 %v897
      %v1103 = vpop.f32.mrb[0].mxu0
      %v1104 = vadd.f32 %v614, %v1103
      %v1105 = vpop.f32.mrb[0].mxu0
      %v1106 = vpop.f32.mrb[0].mxu0
      %v1107 = vadd.f32 %v619, %v1106
      %v1108 = vpop.f32.mrb[0].mxu0
      %1109 = vmatprep.mubr.bf16.mxu0 %v902
      %1110 = vmatmul.mubr.bf16.gmra.mrb[0].mxu0 %v901
      %v1111 = vpop.f32.mrb[0].mxu0
      %v1112 = vadd.f32 %v624, %v1111
      %v1113 = vpop.f32.mrb[0].mxu0
      %v1114 = vpop.f32.mrb[0].mxu0
      %v1115 = vadd.f32 %v629, %v1114
      %v1116 = vpop.f32.mrb[0].mxu0
      %1117 = vmatprep.mubr.bf16.mxu0 %v906
      %1118 = vmatmul.mubr.bf16.gmra.mrb[0].mxu0 %v905
      %v1119 = vpop.f32.mrb[0].mxu0
      %v1120 = vadd.f32 %v634, %v1119
      %v1121 = vpop.f32.mrb[0].mxu0
      %v1122 = vpop.f32.mrb[0].mxu0
      %v1123 = vadd.f32 %v639, %v1122
      %v1124 = vpop.f32.mrb[0].mxu0
      %1125 = vmatprep.mubr.bf16.mxu0 %v910
      %1126 = vmatmul.mubr.bf16.gmra.mrb[0].mxu0 %v909
      %v1127 = vpop.f32.mrb[0].mxu0
      %v1128 = vadd.f32 %v644, %v1127
      %v1129 = vpop.f32.mrb[0].mxu0
      %v1130 = vpop.f32.mrb[0].mxu0
      %v1131 = vadd.f32 %v649, %v1130
      %v1132 = vpop.f32.mrb[0].mxu0
      %1133 = vmatprep.mubr.bf16.mxu0 %v914
      %1134 = vmatmul.mubr.bf16.gmra.mrb[0].mxu0 %v913
      %v1135 = vpop.f32.mrb[0].mxu0
      %v1136 = vadd.f32 %v654, %v1135
      %v1137 = vpop.f32.mrb[0].mxu0
      %v1138 = vpop.f32.mrb[0].mxu0
      %v1139 = vadd.f32 %v659, %v1138
      %v1140 = vpop.f32.mrb[0].mxu0
      %1141 = vdwg.mxu0
      %1142 = vmatprep.subr.bf16.mxu0 0
      %1143 = vmatpush1.bf16.msra.mxu0 %v389
      %1144 = vmatprep.subr.bf16.mxu0 0
      %1145 = vmatpush1.bf16.msra.mxu0 %v390
      %1146 = vmatprep.subr.bf16.mxu0 0
      %1147 = vmatpush1.bf16.msra.mxu0 %v391
      %1148 = vmatprep.subr.bf16.mxu0 0
      %1149 = vmatpush1.bf16.msra.mxu0 %v392
      %1150 = vmatprep.subr.bf16.mxu0 0
      %1151 = vmatpush1.bf16.msra.mxu0 %v393
      %1152 = vmatprep.subr.bf16.mxu0 0
      %1153 = vmatpush1.bf16.msra.mxu0 %v394
      %1154 = vmatprep.subr.bf16.mxu0 0
      %1155 = vmatpush1.bf16.msra.mxu0 %v395
      %1156 = vmatprep.subr.bf16.mxu0 0
      %1157 = vmatpush1.bf16.msra.mxu0 %v396
      %1158 = vmatprep.subr.bf16.mxu0 0
      %1159 = vmatpush1.bf16.msra.mxu0 %v397
      %1160 = vmatprep.subr.bf16.mxu0 0
      %1161 = vmatpush1.bf16.msra.mxu0 %v398
      %1162 = vmatprep.subr.bf16.mxu0 0
      %1163 = vmatpush1.bf16.msra.mxu0 %v399
      %1164 = vmatprep.subr.bf16.mxu0 0
      %1165 = vmatpush1.bf16.msra.mxu0 %v400
      %1166 = vmatprep.subr.bf16.mxu0 0
      %1167 = vmatpush1.bf16.msra.mxu0 %v401
      %1168 = vmatprep.subr.bf16.mxu0 0
      %1169 = vmatpush1.bf16.msra.mxu0 %v402
      %1170 = vmatprep.subr.bf16.mxu0 0
      %1171 = vmatpush1.bf16.msra.mxu0 %v403
      %1172 = vmatprep.subr.bf16.mxu0 0
      %1173 = vmatpush1.bf16.msra.mxu0 %v404
      %1174 = vmatprep.mubr.bf16.mxu0 %v856
      %1175 = vmatmul.mubr.bf16.gmra.mrb[0].mxu0 %v855
      %v1176 = vpop.f32.mrb[0].mxu0
      %v1177 = vadd.f32 %v1016, %v1176
      %v1178 = vpop.f32.mrb[0].mxu0
      %v1179 = vpop.f32.mrb[0].mxu0
      %v1180 = vadd.f32 %v1019, %v1179
      %v1181 = vpop.f32.mrb[0].mxu0
      %1182 = vmatprep.mubr.bf16.mxu0 %v860
      %1183 = vmatmul.mubr.bf16.gmra.mrb[0].mxu0 %v859
      %v1184 = vpop.f32.mrb[0].mxu0
      %v1185 = vadd.f32 %v1024, %v1184
      %v1186 = vpop.f32.mrb[0].mxu0
      %v1187 = vpop.f32.mrb[0].mxu0
      %v1188 = vadd.f32 %v1027, %v1187
      %v1189 = vpop.f32.mrb[0].mxu0
      %1190 = vmatprep.mubr.bf16.mxu0 %v864
      %1191 = vmatmul.mubr.bf16.gmra.mrb[0].mxu0 %v863
      %v1192 = vpop.f32.mrb[0].mxu0
      %v1193 = vadd.f32 %v1032, %v1192
      %v1194 = vpop.f32.mrb[0].mxu0
      %v1195 = vpop.f32.mrb[0].mxu0
      %v1196 = vadd.f32 %v1035, %v1195
      %v1197 = vpop.f32.mrb[0].mxu0
      %1198 = vmatprep.mubr.bf16.mxu0 %v868
      %1199 = vmatmul.mubr.bf16.gmra.mrb[0].mxu0 %v867
      %v1200 = vpop.f32.mrb[0].mxu0
      %v1201 = vadd.f32 %v1040, %v1200
      %v1202 = vpop.f32.mrb[0].mxu0
      %v1203 = vpop.f32.mrb[0].mxu0
      %v1204 = vadd.f32 %v1043, %v1203
      %v1205 = vpop.f32.mrb[0].mxu0
      %1206 = vmatprep.mubr.bf16.mxu0 %v872
      %1207 = vmatmul.mubr.bf16.gmra.mrb[0].mxu0 %v871
      %v1208 = vpop.f32.mrb[0].mxu0
      %v1209 = vadd.f32 %v1048, %v1208
      %v1210 = vpop.f32.mrb[0].mxu0
      %v1211 = vpop.f32.mrb[0].mxu0
      %v1212 = vadd.f32 %v1051, %v1211
      %v1213 = vpop.f32.mrb[0].mxu0
      %1214 = vmatprep.mubr.bf16.mxu0 %v876
      %1215 = vmatmul.mubr.bf16.gmra.mrb[0].mxu0 %v875
      %v1216 = vpop.f32.mrb[0].mxu0
      %v1217 = vadd.f32 %v1056, %v1216
      %v1218 = vpop.f32.mrb[0].mxu0
      %v1219 = vpop.f32.mrb[0].mxu0
      %v1220 = vadd.f32 %v1059, %v1219
      %v1221 = vpop.f32.mrb[0].mxu0
      %1222 = vmatprep.mubr.bf16.mxu0 %v880
      %1223 = vmatmul.mubr.bf16.gmra.mrb[0].mxu0 %v879
      %v1224 = vpop.f32.mrb[0].mxu0
      %v1225 = vadd.f32 %v1064, %v1224
      %v1226 = vpop.f32.mrb[0].mxu0
      %v1227 = vpop.f32.mrb[0].mxu0
      %v1228 = vadd.f32 %v1067, %v1227
      %v1229 = vpop.f32.mrb[0].mxu0
      %1230 = vmatprep.mubr.bf16.mxu0 %v884
      %1231 = vmatmul.mubr.bf16.gmra.mrb[0].mxu0 %v883
      %v1232 = vpop.f32.mrb[0].mxu0
      %v1233 = vadd.f32 %v1072, %v1232
      %v1234 = vpop.f32.mrb[0].mxu0
      %v1235 = vpop.f32.mrb[0].mxu0
      %v1236 = vadd.f32 %v1075, %v1235
      %v1237 = vpop.f32.mrb[0].mxu0
      %1238 = vmatprep.mubr.bf16.mxu0 %v888
      %1239 = vmatmul.mubr.bf16.gmra.mrb[0].mxu0 %v887
      %v1240 = vpop.f32.mrb[0].mxu0
      %v1241 = vadd.f32 %v1080, %v1240
      %v1242 = vpop.f32.mrb[0].mxu0
      %v1243 = vpop.f32.mrb[0].mxu0
      %v1244 = vadd.f32 %v1083, %v1243
      %v1245 = vpop.f32.mrb[0].mxu0
      %1246 = vmatprep.mubr.bf16.mxu0 %v892
      %1247 = vmatmul.mubr.bf16.gmra.mrb[0].mxu0 %v891
      %v1248 = vpop.f32.mrb[0].mxu0
      %v1249 = vadd.f32 %v1088, %v1248
      %v1250 = vpop.f32.mrb[0].mxu0
      %v1251 = vpop.f32.mrb[0].mxu0
      %v1252 = vadd.f32 %v1091, %v1251
      %v1253 = vpop.f32.mrb[0].mxu0
      %1254 = vmatprep.mubr.bf16.mxu0 %v896
      %1255 = vmatmul.mubr.bf16.gmra.mrb[0].mxu0 %v895
      %v1256 = vpop.f32.mrb[0].mxu0
      %v1257 = vadd.f32 %v1096, %v1256
      %v1258 = vpop.f32.mrb[0].mxu0
      %v1259 = vpop.f32.mrb[0].mxu0
      %v1260 = vadd.f32 %v1099, %v1259
      %v1261 = vpop.f32.mrb[0].mxu0
      %1262 = vmatprep.mubr.bf16.mxu0 %v900
      %1263 = vmatmul.mubr.bf16.gmra.mrb[0].mxu0 %v899
      %v1264 = vpop.f32.mrb[0].mxu0
      %v1265 = vadd.f32 %v1104, %v1264
      %v1266 = vpop.f32.mrb[0].mxu0
      %v1267 = vpop.f32.mrb[0].mxu0
      %v1268 = vadd.f32 %v1107, %v1267
      %v1269 = vpop.f32.mrb[0].mxu0
      %1270 = vmatprep.mubr.bf16.mxu0 %v904
      %1271 = vmatmul.mubr.bf16.gmra.mrb[0].mxu0 %v903
      %v1272 = vpop.f32.mrb[0].mxu0
      %v1273 = vadd.f32 %v1112, %v1272
      %v1274 = vpop.f32.mrb[0].mxu0
      %v1275 = vpop.f32.mrb[0].mxu0
      %v1276 = vadd.f32 %v1115, %v1275
      %v1277 = vpop.f32.mrb[0].mxu0
      %1278 = vmatprep.mubr.bf16.mxu0 %v908
      %1279 = vmatmul.mubr.bf16.gmra.mrb[0].mxu0 %v907
      %v1280 = vpop.f32.mrb[0].mxu0
      %v1281 = vadd.f32 %v1120, %v1280
      %v1282 = vpop.f32.mrb[0].mxu0
      %v1283 = vpop.f32.mrb[0].mxu0
      %v1284 = vadd.f32 %v1123, %v1283
      %v1285 = vpop.f32.mrb[0].mxu0
      %1286 = vmatprep.mubr.bf16.mxu0 %v912
      %1287 = vmatmul.mubr.bf16.gmra.mrb[0].mxu0 %v911
      %v1288 = vpop.f32.mrb[0].mxu0
      %v1289 = vadd.f32 %v1128, %v1288
      %v1290 = vpop.f32.mrb[0].mxu0
      %v1291 = vpop.f32.mrb[0].mxu0
      %v1292 = vadd.f32 %v1131, %v1291
      %v1293 = vpop.f32.mrb[0].mxu0
      %1294 = vmatprep.mubr.bf16.mxu0 %v916
      %1295 = vmatmul.mubr.bf16.gmra.mrb[0].mxu0 %v915
      %v1296 = vpop.f32.mrb[0].mxu0
      %v1297 = vadd.f32 %v1136, %v1296
      %v1298 = vpop.f32.mrb[0].mxu0
      %v1299 = vpop.f32.mrb[0].mxu0
      %v1300 = vadd.f32 %v1139, %v1299
      %v1301 = vpop.f32.mrb[0].mxu0
      %1302 = vdwg.mxu0
      %v1303 = vmax.f32 %v1177, 0.0
      %v1304 = vmax.f32 %v1180, 0.0
      %v1305 = vmax.f32 %v1185, 0.0
      %v1306 = vmax.f32 %v1188, 0.0
      %v1307 = vmax.f32 %v1193, 0.0
      %v1308 = vmax.f32 %v1196, 0.0
      %v1309 = vmax.f32 %v1201, 0.0
      %v1310 = vmax.f32 %v1204, 0.0
      %v1311 = vmax.f32 %v1209, 0.0
      %v1312 = vmax.f32 %v1212, 0.0
      %v1313 = vmax.f32 %v1217, 0.0
      %v1314 = vmax.f32 %v1220, 0.0
      %v1315 = vmax.f32 %v1225, 0.0
      %v1316 = vmax.f32 %v1228, 0.0
      %v1317 = vmax.f32 %v1233, 0.0
      %v1318 = vmax.f32 %v1236, 0.0
      %v1319 = vmax.f32 %v1241, 0.0
      %v1320 = vmax.f32 %v1244, 0.0
      %v1321 = vmax.f32 %v1249, 0.0
      %v1322 = vmax.f32 %v1252, 0.0
      %v1323 = vmax.f32 %v1257, 0.0
      %v1324 = vmax.f32 %v1260, 0.0
      %v1325 = vmax.f32 %v1265, 0.0
      %v1326 = vmax.f32 %v1268, 0.0
      %v1327 = vmax.f32 %v1273, 0.0
      %v1328 = vmax.f32 %v1276, 0.0
      %v1329 = vmax.f32 %v1281, 0.0
      %v1330 = vmax.f32 %v1284, 0.0
      %v1331 = vmax.f32 %v1289, 0.0
      %v1332 = vmax.f32 %v1292, 0.0
      %v1333 = vmax.f32 %v1297, 0.0
      %v1334 = vmax.f32 %v1300, 0.0
      %v1335 = vpack.c.bf16 %v1304, %v1303
      %v1336 = vpack.c.bf16 %v1306, %v1305
      %v1337 = vpack.c.bf16 %v1308, %v1307
      %v1338 = vpack.c.bf16 %v1310, %v1309
      %v1339 = vpack.c.bf16 %v1312, %v1311
      %v1340 = vpack.c.bf16 %v1314, %v1313
      %v1341 = vpack.c.bf16 %v1316, %v1315
      %v1342 = vpack.c.bf16 %v1318, %v1317
      %v1343 = vpack.c.bf16 %v1320, %v1319
      %v1344 = vpack.c.bf16 %v1322, %v1321
      %v1345 = vpack.c.bf16 %v1324, %v1323
      %v1346 = vpack.c.bf16 %v1326, %v1325
      %v1347 = vpack.c.bf16 %v1328, %v1327
      %v1348 = vpack.c.bf16 %v1330, %v1329
      %v1349 = vpack.c.bf16 %v1332, %v1331
      %v1350 = vpack.c.bf16 %v1334, %v1333
      %v1351 = vld [vmem:[%s3] sm:$0xff]
      %v1352 = vld [vmem:[%s3 + $0x8] sm:$0xff]
      %v1353 = vld [vmem:[%s3 + $0x10] sm:$0xff]
      %v1354 = vld [vmem:[%s3 + $0x18] sm:$0xff]
      %v1355 = vld [vmem:[%s3 + $0x20] sm:$0xff]
      %v1356 = vld [vmem:[%s3 + $0x28] sm:$0xff]
      %v1357 = vld [vmem:[%s3 + $0x30] sm:$0xff]
      %v1358 = vld [vmem:[%s3 + $0x38] sm:$0xff]
      %v1359 = vld [vmem:[%s3 + $0x40] sm:$0xff]
      %v1360 = vld [vmem:[%s3 + $0x48] sm:$0xff]
      %v1361 = vld [vmem:[%s3 + $0x50] sm:$0xff]
      %v1362 = vld [vmem:[%s3 + $0x58] sm:$0xff]
      %v1363 = vld [vmem:[%s3 + $0x60] sm:$0xff]
      %v1364 = vld [vmem:[%s3 + $0x68] sm:$0xff]
      %v1365 = vld [vmem:[%s3 + $0x70] sm:$0xff]
      %v1366 = vld [vmem:[%s3 + $0x78] sm:$0xff]
      %v1367 = vld [vmem:[%s4] sm:$0xff]
      %v1368 = vld [vmem:[%s4 + $0x8] sm:$0xff]
      %v1369 = vld [vmem:[%s4 + $0x10] sm:$0xff]
      %v1370 = vld [vmem:[%s4 + $0x18] sm:$0xff]
      %v1371 = vld [vmem:[%s4 + $0x20] sm:$0xff]
      %v1372 = vld [vmem:[%s4 + $0x28] sm:$0xff]
      %v1373 = vld [vmem:[%s4 + $0x30] sm:$0xff]
      %v1374 = vld [vmem:[%s4 + $0x38] sm:$0xff]
      %v1375 = vld [vmem:[%s4 + $0x40] sm:$0xff]
      %v1376 = vld [vmem:[%s4 + $0x48] sm:$0xff]
      %v1377 = vld [vmem:[%s4 + $0x50] sm:$0xff]
      %v1378 = vld [vmem:[%s4 + $0x58] sm:$0xff]
      %v1379 = vld [vmem:[%s4 + $0x60] sm:$0xff]
      %v1380 = vld [vmem:[%s4 + $0x68] sm:$0xff]
      %v1381 = vld [vmem:[%s4 + $0x70] sm:$0xff]
      %v1382 = vld [vmem:[%s4 + $0x78] sm:$0xff]
      %1384 = vset.pattern.permute.xlu0 0
      %1385 = vperm.xlu0 %1384, %v1367
      %v1386 = vpop.permute.xlu0 %1385
      %1389 = vset.pattern.permute.xlu0 0
      %1390 = vperm.xlu0 %1389, %v1368
      %v1391 = vpop.permute.xlu0 %1390
      %1394 = vset.pattern.permute.xlu0 0
      %1395 = vperm.xlu0 %1394, %v1369
      %v1396 = vpop.permute.xlu0 %1395
      %1399 = vset.pattern.permute.xlu0 0
      %1400 = vperm.xlu0 %1399, %v1370
      %v1401 = vpop.permute.xlu0 %1400
      %1404 = vset.pattern.permute.xlu0 0
      %1405 = vperm.xlu0 %1404, %v1371
      %v1406 = vpop.permute.xlu0 %1405
      %1409 = vset.pattern.permute.xlu0 0
      %1410 = vperm.xlu0 %1409, %v1372
      %v1411 = vpop.permute.xlu0 %1410
      %1414 = vset.pattern.permute.xlu0 0
      %1415 = vperm.xlu0 %1414, %v1373
      %v1416 = vpop.permute.xlu0 %1415
      %1419 = vset.pattern.permute.xlu0 0
      %1420 = vperm.xlu0 %1419, %v1374
      %v1421 = vpop.permute.xlu0 %1420
      %1424 = vset.pattern.permute.xlu0 0
      %1425 = vperm.xlu0 %1424, %v1375
      %v1426 = vpop.permute.xlu0 %1425
      %1429 = vset.pattern.permute.xlu0 0
      %1430 = vperm.xlu0 %1429, %v1376
      %v1431 = vpop.permute.xlu0 %1430
      %1434 = vset.pattern.permute.xlu0 0
      %1435 = vperm.xlu0 %1434, %v1377
      %v1436 = vpop.permute.xlu0 %1435
      %1439 = vset.pattern.permute.xlu0 0
      %1440 = vperm.xlu0 %1439, %v1378
      %v1441 = vpop.permute.xlu0 %1440
      %1444 = vset.pattern.permute.xlu0 0
      %1445 = vperm.xlu0 %1444, %v1379
      %v1446 = vpop.permute.xlu0 %1445
      %1449 = vset.pattern.permute.xlu0 0
      %1450 = vperm.xlu0 %1449, %v1380
      %v1451 = vpop.permute.xlu0 %1450
      %1454 = vset.pattern.permute.xlu0 0
      %1455 = vperm.xlu0 %1454, %v1381
      %v1456 = vpop.permute.xlu0 %1455
      %1459 = vset.pattern.permute.xlu0 0
      %1460 = vperm.xlu0 %1459, %v1382
      %v1461 = vpop.permute.xlu0 %1460
      %v1479 = vunpack.c.l.b16 %v1351
      %v1480 = vunpack.c.h.b16 %v1351
      %v1481 = vunpack.c.l.b16 %v1352
      %v1482 = vunpack.c.h.b16 %v1352
      %v1483 = vunpack.c.l.b16 %v1353
      %v1484 = vunpack.c.h.b16 %v1353
      %v1485 = vunpack.c.l.b16 %v1354
      %v1486 = vunpack.c.h.b16 %v1354
      %v1487 = vunpack.c.l.b16 %v1355
      %v1488 = vunpack.c.h.b16 %v1355
      %v1489 = vunpack.c.l.b16 %v1356
      %v1490 = vunpack.c.h.b16 %v1356
      %v1491 = vunpack.c.l.b16 %v1357
      %v1492 = vunpack.c.h.b16 %v1357
      %v1493 = vunpack.c.l.b16 %v1358
      %v1494 = vunpack.c.h.b16 %v1358
      %v1495 = vunpack.c.l.b16 %v1359
      %v1496 = vunpack.c.h.b16 %v1359
      %v1497 = vunpack.c.l.b16 %v1360
      %v1498 = vunpack.c.h.b16 %v1360
      %v1499 = vunpack.c.l.b16 %v1361
      %v1500 = vunpack.c.h.b16 %v1361
      %v1501 = vunpack.c.l.b16 %v1362
      %v1502 = vunpack.c.h.b16 %v1362
      %v1503 = vunpack.c.l.b16 %v1363
      %v1504 = vunpack.c.h.b16 %v1363
      %v1505 = vunpack.c.l.b16 %v1364
      %v1506 = vunpack.c.h.b16 %v1364
      %v1507 = vunpack.c.l.b16 %v1365
      %v1508 = vunpack.c.h.b16 %v1365
      %v1509 = vunpack.c.l.b16 %v1366
      %v1510 = vunpack.c.h.b16 %v1366
      %v1511 = vpack.c.b16 %v1481, %v1479
      %v1512 = vpack.c.b16 %v1482, %v1480
      %v1513 = vpack.c.b16 %v1485, %v1483
      %v1514 = vpack.c.b16 %v1486, %v1484
      %v1515 = vpack.c.b16 %v1489, %v1487
      %v1516 = vpack.c.b16 %v1490, %v1488
      %v1517 = vpack.c.b16 %v1493, %v1491
      %v1518 = vpack.c.b16 %v1494, %v1492
      %v1519 = vpack.c.b16 %v1497, %v1495
      %v1520 = vpack.c.b16 %v1498, %v1496
      %v1521 = vpack.c.b16 %v1501, %v1499
      %v1522 = vpack.c.b16 %v1502, %v1500
      %v1523 = vpack.c.b16 %v1505, %v1503
      %v1524 = vpack.c.b16 %v1506, %v1504
      %v1525 = vpack.c.b16 %v1509, %v1507
      %v1526 = vpack.c.b16 %v1510, %v1508
      %1543 = vmatprep.subr.bf16.mxu0 0
      %1544 = vmatpush1.bf16.msra.mxu0 %v1335
      %1545 = vmatprep.subr.bf16.mxu0 0
      %1546 = vmatpush1.bf16.msra.mxu0 %v1336
      %1547 = vmatprep.subr.bf16.mxu0 0
      %1548 = vmatpush1.bf16.msra.mxu0 %v1337
      %1549 = vmatprep.subr.bf16.mxu0 0
      %1550 = vmatpush1.bf16.msra.mxu0 %v1338
      %1551 = vmatprep.subr.bf16.mxu0 0
      %1552 = vmatpush1.bf16.msra.mxu0 %v1339
      %1553 = vmatprep.subr.bf16.mxu0 0
      %1554 = vmatpush1.bf16.msra.mxu0 %v1340
      %1555 = vmatprep.subr.bf16.mxu0 0
      %1556 = vmatpush1.bf16.msra.mxu0 %v1341
      %1557 = vmatprep.subr.bf16.mxu0 0
      %1558 = vmatpush1.bf16.msra.mxu0 %v1342
      %1559 = vmatprep.subr.bf16.mxu0 0
      %1560 = vmatpush1.bf16.msra.mxu0 %v1343
      %1561 = vmatprep.subr.bf16.mxu0 0
      %1562 = vmatpush1.bf16.msra.mxu0 %v1344
      %1563 = vmatprep.subr.bf16.mxu0 0
      %1564 = vmatpush1.bf16.msra.mxu0 %v1345
      %1565 = vmatprep.subr.bf16.mxu0 0
      %1566 = vmatpush1.bf16.msra.mxu0 %v1346
      %1567 = vmatprep.subr.bf16.mxu0 0
      %1568 = vmatpush1.bf16.msra.mxu0 %v1347
      %1569 = vmatprep.subr.bf16.mxu0 0
      %1570 = vmatpush1.bf16.msra.mxu0 %v1348
      %1571 = vmatprep.subr.bf16.mxu0 0
      %1572 = vmatpush1.bf16.msra.mxu0 %v1349
      %1573 = vmatprep.subr.bf16.mxu0 0
      %1574 = vmatpush1.bf16.msra.mxu0 %v1350
      %1575 = vmatprep.mubr.bf16.mxu0 %v1512
      %1576 = vmatmul.mubr.bf16.gmra.mrb[0].mxu0 %v1511
      %v1577 = vpop.f32.mrb[0].mxu0
      %v1578 = vadd.f32 %v1386, %v1577
      %v1579 = vpop.f32.mrb[0].mxu0
      %v1580 = vpop.f32.mrb[0].mxu0
      %v1581 = vadd.f32 %v1391, %v1580
      %v1582 = vpop.f32.mrb[0].mxu0
      %1583 = vmatprep.mubr.bf16.mxu0 %v1514
      %1584 = vmatmul.mubr.bf16.gmra.mrb[0].mxu0 %v1513
      %v1585 = vpop.f32.mrb[0].mxu0
      %v1586 = vadd.f32 %v1396, %v1585
      %v1587 = vpop.f32.mrb[0].mxu0
      %v1588 = vpop.f32.mrb[0].mxu0
      %v1589 = vadd.f32 %v1401, %v1588
      %v1590 = vpop.f32.mrb[0].mxu0
      %1591 = vmatprep.mubr.bf16.mxu0 %v1516
      %1592 = vmatmul.mubr.bf16.gmra.mrb[0].mxu0 %v1515
      %v1593 = vpop.f32.mrb[0].mxu0
      %v1594 = vadd.f32 %v1406, %v1593
      %v1595 = vpop.f32.mrb[0].mxu0
      %v1596 = vpop.f32.mrb[0].mxu0
      %v1597 = vadd.f32 %v1411, %v1596
      %v1598 = vpop.f32.mrb[0].mxu0
      %1599 = vmatprep.mubr.bf16.mxu0 %v1518
      %1600 = vmatmul.mubr.bf16.gmra.mrb[0].mxu0 %v1517
      %v1601 = vpop.f32.mrb[0].mxu0
      %v1602 = vadd.f32 %v1416, %v1601
      %v1603 = vpop.f32.mrb[0].mxu0
      %v1604 = vpop.f32.mrb[0].mxu0
      %v1605 = vadd.f32 %v1421, %v1604
      %v1606 = vpop.f32.mrb[0].mxu0
      %1607 = vmatprep.mubr.bf16.mxu0 %v1520
      %1608 = vmatmul.mubr.bf16.gmra.mrb[0].mxu0 %v1519
      %v1609 = vpop.f32.mrb[0].mxu0
      %v1610 = vadd.f32 %v1426, %v1609
      %v1611 = vpop.f32.mrb[0].mxu0
      %v1612 = vpop.f32.mrb[0].mxu0
      %v1613 = vadd.f32 %v1431, %v1612
      %v1614 = vpop.f32.mrb[0].mxu0
      %1615 = vmatprep.mubr.bf16.mxu0 %v1522
      %1616 = vmatmul.mubr.bf16.gmra.mrb[0].mxu0 %v1521
      %v1617 = vpop.f32.mrb[0].mxu0
      %v1618 = vadd.f32 %v1436, %v1617
      %v1619 = vpop.f32.mrb[0].mxu0
      %v1620 = vpop.f32.mrb[0].mxu0
      %v1621 = vadd.f32 %v1441, %v1620
      %v1622 = vpop.f32.mrb[0].mxu0
      %1623 = vmatprep.mubr.bf16.mxu0 %v1524
      %1624 = vmatmul.mubr.bf16.gmra.mrb[0].mxu0 %v1523
      %v1625 = vpop.f32.mrb[0].mxu0
      %v1626 = vadd.f32 %v1446, %v1625
      %v1627 = vpop.f32.mrb[0].mxu0
      %v1628 = vpop.f32.mrb[0].mxu0
      %v1629 = vadd.f32 %v1451, %v1628
      %v1630 = vpop.f32.mrb[0].mxu0
      %1631 = vmatprep.mubr.bf16.mxu0 %v1526
      %1632 = vmatmul.mubr.bf16.gmra.mrb[0].mxu0 %v1525
      %v1633 = vpop.f32.mrb[0].mxu0
      %v1634 = vadd.f32 %v1456, %v1633
      %v1635 = vpop.f32.mrb[0].mxu0
      %v1636 = vpop.f32.mrb[0].mxu0
      %v1637 = vadd.f32 %v1461, %v1636
      %v1638 = vpop.f32.mrb[0].mxu0
      %1639 = vdwg.mxu0
      %v1640 = vmax.f32 %v1578, 0.0
      %v1641 = vmax.f32 %v1581, 0.0
      %v1642 = vmax.f32 %v1586, 0.0
      %v1643 = vmax.f32 %v1589, 0.0
      %v1644 = vmax.f32 %v1594, 0.0
      %v1645 = vmax.f32 %v1597, 0.0
      %v1646 = vmax.f32 %v1602, 0.0
      %v1647 = vmax.f32 %v1605, 0.0
      %v1648 = vmax.f32 %v1610, 0.0
      %v1649 = vmax.f32 %v1613, 0.0
      %v1650 = vmax.f32 %v1618, 0.0
      %v1651 = vmax.f32 %v1621, 0.0
      %v1652 = vmax.f32 %v1626, 0.0
      %v1653 = vmax.f32 %v1629, 0.0
      %v1654 = vmax.f32 %v1634, 0.0
      %v1655 = vmax.f32 %v1637, 0.0
      %v1656 = vpack.c.bf16 %v1641, %v1640
      %v1657 = vpack.c.bf16 %v1643, %v1642
      %v1658 = vpack.c.bf16 %v1645, %v1644
      %v1659 = vpack.c.bf16 %v1647, %v1646
      %v1660 = vpack.c.bf16 %v1649, %v1648
      %v1661 = vpack.c.bf16 %v1651, %v1650
      %v1662 = vpack.c.bf16 %v1653, %v1652
      %v1663 = vpack.c.bf16 %v1655, %v1654
      %v1664 = vld [vmem:[%s5] sm:$0xf]
      %v1665 = vld [vmem:[%s6] sm:$0xff]
      %1667 = vset.pattern.permute.xlu0 0
      %1668 = vperm.xlu0 %1667, %v1665
      %v1669 = vpop.permute.xlu0 %1668
      %1671 = vmatprep.subr.bf16.mxu0 0
      %1672 = vmatpush1.bf16.msra.mxu0 %v1656
      %1673 = vmatprep.subr.bf16.mxu0 0
      %1674 = vmatpush1.bf16.msra.mxu0 %v1657
      %1675 = vmatprep.subr.bf16.mxu0 0
      %1676 = vmatpush1.bf16.msra.mxu0 %v1658
      %1677 = vmatprep.subr.bf16.mxu0 0
      %1678 = vmatpush1.bf16.msra.mxu0 %v1659
      %1679 = vmatprep.subr.bf16.mxu0 0
      %1680 = vmatpush1.bf16.msra.mxu0 %v1660
      %1681 = vmatprep.subr.bf16.mxu0 0
      %1682 = vmatpush1.bf16.msra.mxu0 %v1661
      %1683 = vmatprep.subr.bf16.mxu0 0
      %1684 = vmatpush1.bf16.msra.mxu0 %v1662
      %1685 = vmatprep.subr.bf16.mxu0 0
      %1686 = vmatpush1.bf16.msra.mxu0 %v1663
      %1687 = vmatprep.subr.bf16.mxu0 0
      %1688 = vmatpush1.bf16.msra.mxu0 0
      %1689 = vmatprep.subr.bf16.mxu0 0
      %1690 = vmatpush1.bf16.msra.mxu0 0
      %1691 = vmatprep.subr.bf16.mxu0 0
      %1692 = vmatpush1.bf16.msra.mxu0 0
      %1693 = vmatprep.subr.bf16.mxu0 0
      %1694 = vmatpush1.bf16.msra.mxu0 0
      %1695 = vmatprep.subr.bf16.mxu0 0
      %1696 = vmatpush1.bf16.msra.mxu0 0
      %1697 = vmatprep.subr.bf16.mxu0 0
      %1698 = vmatpush1.bf16.msra.mxu0 0
      %1699 = vmatprep.subr.bf16.mxu0 0
      %1700 = vmatpush1.bf16.msra.mxu0 0
      %1701 = vmatprep.subr.bf16.mxu0 0
      %1702 = vmatpush1.bf16.msra.mxu0 0
      %1703 = vmatprep.mubr.bf16.mxu0 0
      %1704 = vmatmul.mubr.bf16.gmra.mrb[0].mxu0 %v1664
      %v1705 = vpop.f32.mrb[0].mxu0
      %v1706 = vadd.f32 %v1669, %v1705
      %v1707 = vpop.f32.mrb[0].mxu0
      %v1708 = vpop.f32.mrb[0].mxu0
      %v1709 = vpop.f32.mrb[0].mxu0
      %1710 = vdwg.mxu0
      %vm1711 = vcmask 56320
      %1712 = vst.msk [vmem:[%s307] sm:$0xff] %vm1711, %v1706
      %p1713 = scmp.lt.s32.totalorder %s22, 3
      %s1714 = scalar_select %p1713, %s22, 3
      %p1715 = scmp.lt.s32.totalorder %s23, 0
      %s1716 = scalar_select %p1715, %s23, 0
      %s1717 = sadd.s32 %s1716, %s1714
      %s1718 = smul.addr %s1717, 8
      %s1719 = scalar_lea.vmem %s7, %s1718
      // Predicated region
      $region49: #{model_forward.1} parent=47 // pred_check
        %p1720 = pneg %p204
      $region50: #{model_forward.1} parent=47 // pred_check_branch
        %1722 = sbr.rel (%p1720) target = $region52
      $region51: #{model_forward.1} parent=47 // pred_region
        _
      $region52: #{model_forward.1} parent=47 // pred_fallthru
        _
    $region48: #{model_forward.1} parent=5 // pred_fallthru
      _
    %p1723 = scmp.le.s32.totalorder 2, %s13
    // Predicated region
    $region53: #{model_forward.1} parent=5 // pred_check
      %p1724 = pneg %p1723
    $region54: #{model_forward.1} parent=5 // pred_check_branch
      %1726 = sbr.rel (%p1724) target = $region56
    $region55: #{model_forward.1} parent=5 // pred_region
      %s1727 = ssub.s32 %s13, 2
      // Predicated region
      $region57: #{model_forward.1} parent=55 // pred_check
        %p1728 = pneg %p210
      $region58: #{model_forward.1} parent=55 // pred_check_branch
        %1730 = sbr.rel (%p1728) target = $region60
      $region59: #{model_forward.1} parent=55 // pred_region
        %p1731 = scmp.lt.s32.totalorder %s24, 3
        %s1732 = scalar_select %p1731, %s24, 3
        %p1733 = scmp.lt.s32.totalorder %s25, 0
        %s1734 = scalar_select %p1733, %s25, 0
        %s1735 = sadd.s32 %s1734, %s1732
        %s1736 = smul.addr %s1735, 8
        %s1737 = scalar_lea.vmem %s7, %s1736
      $region60: #{model_forward.1} parent=55 // pred_fallthru
        _
    $region56: #{model_forward.1} parent=5 // pred_fallthru
      _
  $region6: #{model_forward.1} parent=0 // loop_footer
    %s17 = sadd.s32 1, %s13
  $region7: #{model_forward.1} parent=0 // loop_footer_branch
    %12 = sbr.rel target = $region3
  $region8: #{model_forward.1} parent=0 // loop_exit
    _

</llo_original>
